<compile_context>
chip_gen: v5e
topology: v5e:2x2
jax: 0.10.0
libtpu: 0.0.40
codegen_flags: <defaults>
</compile_context>

<pallas_src>
import jax
import jax.numpy as jnp
from jax.experimental import pallas as pl
from jax.experimental.pallas import tpu as pltpu


# ----------------------------------------------------------------------------
# helpers
# ----------------------------------------------------------------------------
def _round_up(x, m):
    return (x + m - 1) // m * m


def _pad2d(x, rows, cols):
    r, c = x.shape
    return jnp.pad(x, ((0, rows - r), (0, cols - c)))


def _choose_m_tiling(m, max_tile=512):
    """Pick an (8-aligned) M tile and the padded M extent."""
    tile = min(max_tile, _round_up(m, 8))
    return tile, _round_up(m, tile)


_VMEM_LIMIT = 32 * 1024 * 1024  # safe on v5e/v6e (128 MiB) and v7x (64 MiB)


# ----------------------------------------------------------------------------
# Pallas kernels
# ----------------------------------------------------------------------------
def _conv_pool_kernel(c00_ref, c01_ref, c10_ref, c11_ref, w_ref, b_ref, o_ref):
    """Fused conv(im2col matmul) + bias + ReLU + 2x2 max-pool.

    The four inputs are the im2col slabs of the four corners of each pooling
    window; pooling is an elementwise max over the four MXU results.
    """
    w = w_ref[...]
    y00 = jnp.dot(c00_ref[...], w, preferred_element_type=jnp.float32)
    y01 = jnp.dot(c01_ref[...], w, preferred_element_type=jnp.float32)
    y10 = jnp.dot(c10_ref[...], w, preferred_element_type=jnp.float32)
    y11 = jnp.dot(c11_ref[...], w, preferred_element_type=jnp.float32)
    m = jnp.maximum(jnp.maximum(y00, y01), jnp.maximum(y10, y11))
    # max(relu(y + b)) == relu(max(y) + b)  (monotone), so bias/ReLU once.
    o_ref[...] = jnp.maximum(m + b_ref[...], 0.0).astype(o_ref.dtype)


def _fc_stack_kernel(x_ref, w1_ref, b1_ref, w2_ref, b2_ref, w3_ref, b3_ref,
                     o_ref):
    """Fused fc1+ReLU -> fc2+ReLU -> fc3, all weights resident in VMEM."""
    h = jnp.dot(x_ref[...], w1_ref[...], preferred_element_type=jnp.float32)
    h = jnp.maximum(h + b1_ref[...], 0.0)
    h = jnp.dot(h, w2_ref[...], preferred_element_type=jnp.float32)
    h = jnp.maximum(h + b2_ref[...], 0.0)
    h = jnp.dot(h, w3_ref[...], preferred_element_type=jnp.float32)
    o_ref[...] = (h + b3_ref[...]).astype(o_ref.dtype)


# ----------------------------------------------------------------------------
# Conv2d(k, stride 1, no pad) + ReLU + MaxPool(2,2)  -- one Pallas call
# ----------------------------------------------------------------------------
def conv2d_relu_pool(x, w, b):
    """x: (B, Cin, H, W), w: (Cout, Cin, k, k), b: (Cout,) -> (B, Cout, Ho/2, Wo/2)."""
    B, Cin, H, W = x.shape
    Cout, _, k, _ = w.shape
    Ho, Wo = H - k + 1, W - k + 1
    Hp, Wp = Ho // 2, Wo // 2
    K = Cin * k * k
    Kp = _round_up(K, 128)
    Np = _round_up(Cout, 128)

    def corner_cols(p_off, q_off):
        # im2col restricted to conv-output positions (2i+p_off, 2j+q_off);
        # K ordering is (Cin, kh, kw) to match PyTorch's weight flatten.
        patches = []
        for di in range(k):
            for dj in range(k):
                patches.append(
                    x[:, :,
                      p_off + di: p_off + di + 2 * Hp: 2,
                      q_off + dj: q_off + dj + 2 * Wp: 2])
        pch = jnp.stack(patches, axis=2)          # (B, Cin, k*k, Hp, Wp)
        pch = pch.transpose(0, 3, 4, 1, 2)        # (B, Hp, Wp, Cin, k*k)
        return pch.reshape(B * Hp * Wp, K)

    cols = [corner_cols(p, q) for p in (0, 1) for q in (0, 1)]

    M = B * Hp * Wp
    tile_m, Mp = _choose_m_tiling(M)
    cols = [_pad2d(c, Mp, Kp) for c in cols]                      # lane-dense K
    w2 = _pad2d(w.reshape(Cout, K).T, Kp, Np)                     # (Kp, Np)
    b2 = _pad2d(b.reshape(1, Cout), 1, Np)                        # (1, Np)

    out = pl.pallas_call(
        _conv_pool_kernel,
        out_shape=jax.ShapeDtypeStruct((Mp, Np), x.dtype),
        grid=(Mp // tile_m,),
        in_specs=[pl.BlockSpec((tile_m, Kp), lambda i: (i, 0))] * 4 + [
            pl.BlockSpec((Kp, Np), lambda i: (0, 0)),
            pl.BlockSpec((1, Np), lambda i: (0, 0)),
        ],
        out_specs=pl.BlockSpec((tile_m, Np), lambda i: (i, 0)),
        compiler_params=pltpu.CompilerParams(
            dimension_semantics=("parallel",),
            vmem_limit_bytes=_VMEM_LIMIT),
    )(*cols, w2, b2)

    # drop row / lane padding, restore NCHW (PyTorch layout)
    out = out[:M, :Cout].reshape(B, Hp, Wp, Cout).transpose(0, 3, 1, 2)
    return out


# ----------------------------------------------------------------------------
# Fused fc1 -> fc2 -> fc3  -- one Pallas call
# ----------------------------------------------------------------------------
def fc_stack(x, w1, b1, w2, b2, w3, b3):
    """x: (B, 400) -> logits (B, 10); all three FCs fused, weights in VMEM."""
    B, K1 = x.shape
    N1, N2, N3 = w1.shape[1], w2.shape[1], w3.shape[1]
    K1p = _round_up(K1, 128)
    N1p = _round_up(N1, 128)
    N2p = _round_up(N2, 128)
    N3p = _round_up(N3, 128)

    tile_m, Mp = _choose_m_tiling(B)
    xp = _pad2d(x, Mp, K1p)
    w1p = _pad2d(w1, K1p, N1p)
    b1p = _pad2d(b1.reshape(1, N1), 1, N1p)
    w2p = _pad2d(w2, N1p, N2p)
    b2p = _pad2d(b2.reshape(1, N2), 1, N2p)
    w3p = _pad2d(w3, N2p, N3p)
    b3p = _pad2d(b3.reshape(1, N3), 1, N3p)

    out = pl.pallas_call(
        _fc_stack_kernel,
        out_shape=jax.ShapeDtypeStruct((Mp, N3p), x.dtype),
        grid=(Mp // tile_m,),
        in_specs=[
            pl.BlockSpec((tile_m, K1p), lambda i: (i, 0)),
            pl.BlockSpec((K1p, N1p), lambda i: (0, 0)),
            pl.BlockSpec((1, N1p), lambda i: (0, 0)),
            pl.BlockSpec((N1p, N2p), lambda i: (0, 0)),
            pl.BlockSpec((1, N2p), lambda i: (0, 0)),
            pl.BlockSpec((N2p, N3p), lambda i: (0, 0)),
            pl.BlockSpec((1, N3p), lambda i: (0, 0)),
        ],
        out_specs=pl.BlockSpec((tile_m, N3p), lambda i: (i, 0)),
        compiler_params=pltpu.CompilerParams(
            dimension_semantics=("parallel",),
            vmem_limit_bytes=_VMEM_LIMIT),
    )(xp, w1p, b1p, w2p, b2p, w3p, b3p)

    return out[:B, :N3]


# ----------------------------------------------------------------------------
# Net forward
# ----------------------------------------------------------------------------
def init_params(key):
    ks = jax.random.split(key, 10)
    s = 0.05
    p = {}
    p["conv1_w"] = jax.random.normal(ks[0], (6, 3, 5, 5), jnp.float32) * s
    p["conv1_b"] = jax.random.normal(ks[1], (6,), jnp.float32) * s
    p["conv2_w"] = jax.random.normal(ks[2], (16, 6, 5, 5), jnp.float32) * s
    p["conv2_b"] = jax.random.normal(ks[3], (16,), jnp.float32) * s
    p["fc1_w"] = jax.random.normal(ks[4], (400, 120), jnp.float32) * s  # (in, out)
    p["fc1_b"] = jax.random.normal(ks[5], (120,), jnp.float32) * s
    p["fc2_w"] = jax.random.normal(ks[6], (120, 84), jnp.float32) * s
    p["fc2_b"] = jax.random.normal(ks[7], (84,), jnp.float32) * s
    p["fc3_w"] = jax.random.normal(ks[8], (84, 10), jnp.float32) * s
    p["fc3_b"] = jax.random.normal(ks[9], (10,), jnp.float32) * s
    return p


@jax.jit
def net_forward(params, x):
    # x: (B, 3, 32, 32) NCHW, as in PyTorch
    x = conv2d_relu_pool(x, params["conv1_w"], params["conv1_b"])  # (B, 6, 14, 14)
    x = conv2d_relu_pool(x, params["conv2_w"], params["conv2_b"])  # (B, 16, 5, 5)
    x = x.reshape(-1, 16 * 5 * 5)                                  # PyTorch (C,H,W) flatten order
    return fc_stack(x,
                    params["fc1_w"], params["fc1_b"],
                    params["fc2_w"], params["fc2_b"],
                    params["fc3_w"], params["fc3_b"])              # (B, 10)


# Pure-JAX reference for sanity-checking the Pallas path.
def net_forward_ref(params, x):
    def conv_ref(x, w, b):
        y = jax.lax.conv_general_dilated(
            x, w, window_strides=(1, 1), padding="VALID",
            dimension_numbers=("NCHW", "OIHW", "NCHW"))
        return jax.nn.relu(y + b[None, :, None, None])

    def pool_ref(x):
        B, C, H, W = x.shape
        return x.reshape(B, C, H // 2, 2, W // 2, 2).max(axis=(3, 5))

    x = pool_ref(conv_ref(x, params["conv1_w"], params["conv1_b"]))
    x = pool_ref(conv_ref(x, params["conv2_w"], params["conv2_b"]))
    x = x.reshape(-1, 400)
    x = jax.nn.relu(x @ params["fc1_w"] + params["fc1_b"])
    x = jax.nn.relu(x @ params["fc2_w"] + params["fc2_b"])
    return x @ params["fc3_w"] + params["fc3_b"]


if __name__ == "__main__":
    key = jax.random.PRNGKey(0)
    pkey, xkey = jax.random.split(key)
    params = init_params(pkey)
    # CIFAR-like input: (batch=2, channels=3, 32, 32) -- required for 16*5*5 flatten
    x = jax.random.normal(xkey, (2, 3, 32, 32), jnp.float32)

    out = net_forward(params, x)
    out = jax.block_until_ready(out)
    assert out.shape == (2, 10), out.shape

    ref = jax.block_until_ready(net_forward_ref(params, x))
    assert jnp.allclose(out, ref, rtol=1e-4, atol=1e-4), (
        float(jnp.max(jnp.abs(out - ref))))

    print("KERNEL_OK")
</pallas_src>

<mosaic_0001>
module attributes {stable_mosaic.version = 11 : i64} {
  func.func @_conv_pool_kernel(%arg0: i32, %arg1: memref<392x128xf32, #tpu.memory_space<vmem>>, %arg2: memref<392x128xf32, #tpu.memory_space<vmem>>, %arg3: memref<392x128xf32, #tpu.memory_space<vmem>>, %arg4: memref<392x128xf32, #tpu.memory_space<vmem>>, %arg5: memref<128x128xf32, #tpu.memory_space<vmem>>, %arg6: memref<1x128xf32, #tpu.memory_space<vmem>>, %arg7: memref<392x128xf32, #tpu.memory_space<vmem>>) attributes {dimension_semantics = [#tpu.dimension_semantics<parallel>], iteration_bounds = array<i64: 1>, scalar_prefetch = 0 : i64, scratch_operands = 0 : i64, tpu.core_type = #tpu.core_type<tc>, window_params = [{transform_indices = @transform_0, window_bounds = array<i64: 392, 128>}, {transform_indices = @transform_1, window_bounds = array<i64: 392, 128>}, {transform_indices = @transform_2, window_bounds = array<i64: 392, 128>}, {transform_indices = @transform_3, window_bounds = array<i64: 392, 128>}, {pipeline_mode = #tpu.pipeline_mode<synchronous>, transform_indices = @transform_4, window_bounds = array<i64: 128, 128>}, {pipeline_mode = #tpu.pipeline_mode<synchronous>, transform_indices = @transform_5, window_bounds = array<i64: 1, 128>}, {transform_indices = @transform_6, window_bounds = array<i64: 392, 128>}]} {
    %c0 = arith.constant 0 : index
    %c0_0 = arith.constant 0 : index
    %0 = vector.load %arg5[%c0, %c0_0] : memref<128x128xf32, #tpu.memory_space<vmem>>, vector<128x128xf32>
    %c0_1 = arith.constant 0 : index
    %c0_2 = arith.constant 0 : index
    %1 = vector.load %arg1[%c0_1, %c0_2] : memref<392x128xf32, #tpu.memory_space<vmem>>, vector<392x128xf32>
    %cst = arith.constant dense<0.000000e+00> : vector<392x128xf32>
    %2 = tpu.matmul %1, %0, %cst {dimension_numbers = #tpu.dot_dimension_numbers<[1], [0], [0], [1], [0, 0, 1, 1], [], []>} : vector<392x128xf32>, vector<128x128xf32>, vector<392x128xf32> -> vector<392x128xf32>
    %c0_3 = arith.constant 0 : index
    %c0_4 = arith.constant 0 : index
    %3 = vector.load %arg2[%c0_3, %c0_4] : memref<392x128xf32, #tpu.memory_space<vmem>>, vector<392x128xf32>
    %cst_5 = arith.constant dense<0.000000e+00> : vector<392x128xf32>
    %4 = tpu.matmul %3, %0, %cst_5 {dimension_numbers = #tpu.dot_dimension_numbers<[1], [0], [0], [1], [0, 0, 1, 1], [], []>} : vector<392x128xf32>, vector<128x128xf32>, vector<392x128xf32> -> vector<392x128xf32>
    %c0_6 = arith.constant 0 : index
    %c0_7 = arith.constant 0 : index
    %5 = vector.load %arg3[%c0_6, %c0_7] : memref<392x128xf32, #tpu.memory_space<vmem>>, vector<392x128xf32>
    %cst_8 = arith.constant dense<0.000000e+00> : vector<392x128xf32>
    %6 = tpu.matmul %5, %0, %cst_8 {dimension_numbers = #tpu.dot_dimension_numbers<[1], [0], [0], [1], [0, 0, 1, 1], [], []>} : vector<392x128xf32>, vector<128x128xf32>, vector<392x128xf32> -> vector<392x128xf32>
    %c0_9 = arith.constant 0 : index
    %c0_10 = arith.constant 0 : index
    %7 = vector.load %arg4[%c0_9, %c0_10] : memref<392x128xf32, #tpu.memory_space<vmem>>, vector<392x128xf32>
    %cst_11 = arith.constant dense<0.000000e+00> : vector<392x128xf32>
    %8 = tpu.matmul %7, %0, %cst_11 {dimension_numbers = #tpu.dot_dimension_numbers<[1], [0], [0], [1], [0, 0, 1, 1], [], []>} : vector<392x128xf32>, vector<128x128xf32>, vector<392x128xf32> -> vector<392x128xf32>
    %9 = arith.maximumf %2, %4 : vector<392x128xf32>
    %10 = arith.maximumf %6, %8 : vector<392x128xf32>
    %11 = arith.maximumf %9, %10 : vector<392x128xf32>
    %c0_12 = arith.constant 0 : index
    %c0_13 = arith.constant 0 : index
    %12 = vector.load %arg6[%c0_12, %c0_13] : memref<1x128xf32, #tpu.memory_space<vmem>>, vector<1x128xf32>
    %13 = vector.broadcast %12 : vector<1x128xf32> to vector<392x128xf32>
    %14 = arith.addf %11, %13 : vector<392x128xf32>
    %cst_14 = arith.constant 0.000000e+00 : f32
    %15 = vector.broadcast %cst_14 : f32 to vector<392x128xf32>
    %16 = arith.maximumf %14, %15 : vector<392x128xf32>
    %c0_15 = arith.constant 0 : index
    %c0_16 = arith.constant 0 : index
    %17 = vector.load %arg7[%c0_15, %c0_16] : memref<392x128xf32, #tpu.memory_space<vmem>>, vector<392x128xf32>
    tpu.vector_store %arg7[%c0_15, %c0_16], %16 {strides = array<i32>} : memref<392x128xf32, #tpu.memory_space<vmem>>, vector<392x128xf32>,
    return
  }
  func.func @transform_0(%arg0: i32) -> (i32, i32) {
    %c0_i32 = arith.constant 0 : i32
    %c0_i32_0 = arith.constant 0 : i32
    return %arg0, %c0_i32 : i32, i32
  }
  func.func @transform_1(%arg0: i32) -> (i32, i32) {
    %c0_i32 = arith.constant 0 : i32
    %c0_i32_0 = arith.constant 0 : i32
    return %arg0, %c0_i32 : i32, i32
  }
  func.func @transform_2(%arg0: i32) -> (i32, i32) {
    %c0_i32 = arith.constant 0 : i32
    %c0_i32_0 = arith.constant 0 : i32
    return %arg0, %c0_i32 : i32, i32
  }
  func.func @transform_3(%arg0: i32) -> (i32, i32) {
    %c0_i32 = arith.constant 0 : i32
    %c0_i32_0 = arith.constant 0 : i32
    return %arg0, %c0_i32 : i32, i32
  }
  func.func @transform_4(%arg0: i32) -> (i32, i32) {
    %c0_i32 = arith.constant 0 : i32
    %c0_i32_0 = arith.constant 0 : i32
    %c0_i32_1 = arith.constant 0 : i32
    return %c0_i32, %c0_i32_0 : i32, i32
  }
  func.func @transform_5(%arg0: i32) -> (i32, i32) {
    %c0_i32 = arith.constant 0 : i32
    %c0_i32_0 = arith.constant 0 : i32
    %c0_i32_1 = arith.constant 0 : i32
    return %c0_i32, %c0_i32_0 : i32, i32
  }
  func.func @transform_6(%arg0: i32) -> (i32, i32) {
    %c0_i32 = arith.constant 0 : i32
    %c0_i32_0 = arith.constant 0 : i32
    return %arg0, %c0_i32 : i32, i32
  }
}

module attributes {stable_mosaic.version = 11 : i64} {
  func.func @_conv_pool_kernel(%arg0: i32, %arg1: memref<56x256xf32, #tpu.memory_space<vmem>>, %arg2: memref<56x256xf32, #tpu.memory_space<vmem>>, %arg3: memref<56x256xf32, #tpu.memory_space<vmem>>, %arg4: memref<56x256xf32, #tpu.memory_space<vmem>>, %arg5: memref<256x128xf32, #tpu.memory_space<vmem>>, %arg6: memref<1x128xf32, #tpu.memory_space<vmem>>, %arg7: memref<56x128xf32, #tpu.memory_space<vmem>>) attributes {dimension_semantics = [#tpu.dimension_semantics<parallel>], iteration_bounds = array<i64: 1>, scalar_prefetch = 0 : i64, scratch_operands = 0 : i64, tpu.core_type = #tpu.core_type<tc>, window_params = [{transform_indices = @transform_0, window_bounds = array<i64: 56, 256>}, {transform_indices = @transform_1, window_bounds = array<i64: 56, 256>}, {transform_indices = @transform_2, window_bounds = array<i64: 56, 256>}, {transform_indices = @transform_3, window_bounds = array<i64: 56, 256>}, {pipeline_mode = #tpu.pipeline_mode<synchronous>, transform_indices = @transform_4, window_bounds = array<i64: 256, 128>}, {pipeline_mode = #tpu.pipeline_mode<synchronous>, transform_indices = @transform_5, window_bounds = array<i64: 1, 128>}, {transform_indices = @transform_6, window_bounds = array<i64: 56, 128>}]} {
    %c0 = arith.constant 0 : index
    %c0_0 = arith.constant 0 : index
    %0 = vector.load %arg5[%c0, %c0_0] : memref<256x128xf32, #tpu.memory_space<vmem>>, vector<256x128xf32>
    %c0_1 = arith.constant 0 : index
    %c0_2 = arith.constant 0 : index
    %1 = vector.load %arg1[%c0_1, %c0_2] : memref<56x256xf32, #tpu.memory_space<vmem>>, vector<56x256xf32>
    %cst = arith.constant dense<0.000000e+00> : vector<56x128xf32>
    %2 = tpu.matmul %1, %0, %cst {dimension_numbers = #tpu.dot_dimension_numbers<[1], [0], [0], [1], [0, 0, 1, 1], [], []>} : vector<56x256xf32>, vector<256x128xf32>, vector<56x128xf32> -> vector<56x128xf32>
    %c0_3 = arith.constant 0 : index
    %c0_4 = arith.constant 0 : index
    %3 = vector.load %arg2[%c0_3, %c0_4] : memref<56x256xf32, #tpu.memory_space<vmem>>, vector<56x256xf32>
    %cst_5 = arith.constant dense<0.000000e+00> : vector<56x128xf32>
    %4 = tpu.matmul %3, %0, %cst_5 {dimension_numbers = #tpu.dot_dimension_numbers<[1], [0], [0], [1], [0, 0, 1, 1], [], []>} : vector<56x256xf32>, vector<256x128xf32>, vector<56x128xf32> -> vector<56x128xf32>
    %c0_6 = arith.constant 0 : index
    %c0_7 = arith.constant 0 : index
    %5 = vector.load %arg3[%c0_6, %c0_7] : memref<56x256xf32, #tpu.memory_space<vmem>>, vector<56x256xf32>
    %cst_8 = arith.constant dense<0.000000e+00> : vector<56x128xf32>
    %6 = tpu.matmul %5, %0, %cst_8 {dimension_numbers = #tpu.dot_dimension_numbers<[1], [0], [0], [1], [0, 0, 1, 1], [], []>} : vector<56x256xf32>, vector<256x128xf32>, vector<56x128xf32> -> vector<56x128xf32>
    %c0_9 = arith.constant 0 : index
    %c0_10 = arith.constant 0 : index
    %7 = vector.load %arg4[%c0_9, %c0_10] : memref<56x256xf32, #tpu.memory_space<vmem>>, vector<56x256xf32>
    %cst_11 = arith.constant dense<0.000000e+00> : vector<56x128xf32>
    %8 = tpu.matmul %7, %0, %cst_11 {dimension_numbers = #tpu.dot_dimension_numbers<[1], [0], [0], [1], [0, 0, 1, 1], [], []>} : vector<56x256xf32>, vector<256x128xf32>, vector<56x128xf32> -> vector<56x128xf32>
    %9 = arith.maximumf %2, %4 : vector<56x128xf32>
    %10 = arith.maximumf %6, %8 : vector<56x128xf32>
    %11 = arith.maximumf %9, %10 : vector<56x128xf32>
    %c0_12 = arith.constant 0 : index
    %c0_13 = arith.constant 0 : index
    %12 = vector.load %arg6[%c0_12, %c0_13] : memref<1x128xf32, #tpu.memory_space<vmem>>, vector<1x128xf32>
    %13 = vector.broadcast %12 : vector<1x128xf32> to vector<56x128xf32>
    %14 = arith.addf %11, %13 : vector<56x128xf32>
    %cst_14 = arith.constant 0.000000e+00 : f32
    %15 = vector.broadcast %cst_14 : f32 to vector<56x128xf32>
    %16 = arith.maximumf %14, %15 : vector<56x128xf32>
    %c0_15 = arith.constant 0 : index
    %c0_16 = arith.constant 0 : index
    %17 = vector.load %arg7[%c0_15, %c0_16] : memref<56x128xf32, #tpu.memory_space<vmem>>, vector<56x128xf32>
    tpu.vector_store %arg7[%c0_15, %c0_16], %16 {strides = array<i32>} : memref<56x128xf32, #tpu.memory_space<vmem>>, vector<56x128xf32>,
    return
  }
  func.func @transform_0(%arg0: i32) -> (i32, i32) {
    %c0_i32 = arith.constant 0 : i32
    %c0_i32_0 = arith.constant 0 : i32
    return %arg0, %c0_i32 : i32, i32
  }
  func.func @transform_1(%arg0: i32) -> (i32, i32) {
    %c0_i32 = arith.constant 0 : i32
    %c0_i32_0 = arith.constant 0 : i32
    return %arg0, %c0_i32 : i32, i32
  }
  func.func @transform_2(%arg0: i32) -> (i32, i32) {
    %c0_i32 = arith.constant 0 : i32
    %c0_i32_0 = arith.constant 0 : i32
    return %arg0, %c0_i32 : i32, i32
  }
  func.func @transform_3(%arg0: i32) -> (i32, i32) {
    %c0_i32 = arith.constant 0 : i32
    %c0_i32_0 = arith.constant 0 : i32
    return %arg0, %c0_i32 : i32, i32
  }
  func.func @transform_4(%arg0: i32) -> (i32, i32) {
    %c0_i32 = arith.constant 0 : i32
    %c0_i32_0 = arith.constant 0 : i32
    %c0_i32_1 = arith.constant 0 : i32
    return %c0_i32, %c0_i32_0 : i32, i32
  }
  func.func @transform_5(%arg0: i32) -> (i32, i32) {
    %c0_i32 = arith.constant 0 : i32
    %c0_i32_0 = arith.constant 0 : i32
    %c0_i32_1 = arith.constant 0 : i32
    return %c0_i32, %c0_i32_0 : i32, i32
  }
  func.func @transform_6(%arg0: i32) -> (i32, i32) {
    %c0_i32 = arith.constant 0 : i32
    %c0_i32_0 = arith.constant 0 : i32
    return %arg0, %c0_i32 : i32, i32
  }
}

module attributes {stable_mosaic.version = 11 : i64} {
  func.func @_fc_stack_kernel(%arg0: i32, %arg1: memref<8x512xf32, #tpu.memory_space<vmem>>, %arg2: memref<512x128xf32, #tpu.memory_space<vmem>>, %arg3: memref<1x128xf32, #tpu.memory_space<vmem>>, %arg4: memref<128x128xf32, #tpu.memory_space<vmem>>, %arg5: memref<1x128xf32, #tpu.memory_space<vmem>>, %arg6: memref<128x128xf32, #tpu.memory_space<vmem>>, %arg7: memref<1x128xf32, #tpu.memory_space<vmem>>, %arg8: memref<8x128xf32, #tpu.memory_space<vmem>>) attributes {dimension_semantics = [#tpu.dimension_semantics<parallel>], iteration_bounds = array<i64: 1>, scalar_prefetch = 0 : i64, scratch_operands = 0 : i64, tpu.core_type = #tpu.core_type<tc>, window_params = [{transform_indices = @transform_0, window_bounds = array<i64: 8, 512>}, {pipeline_mode = #tpu.pipeline_mode<synchronous>, transform_indices = @transform_1, window_bounds = array<i64: 512, 128>}, {pipeline_mode = #tpu.pipeline_mode<synchronous>, transform_indices = @transform_2, window_bounds = array<i64: 1, 128>}, {pipeline_mode = #tpu.pipeline_mode<synchronous>, transform_indices = @transform_3, window_bounds = array<i64: 128, 128>}, {pipeline_mode = #tpu.pipeline_mode<synchronous>, transform_indices = @transform_4, window_bounds = array<i64: 1, 128>}, {pipeline_mode = #tpu.pipeline_mode<synchronous>, transform_indices = @transform_5, window_bounds = array<i64: 128, 128>}, {pipeline_mode = #tpu.pipeline_mode<synchronous>, transform_indices = @transform_6, window_bounds = array<i64: 1, 128>}, {transform_indices = @transform_7, window_bounds = array<i64: 8, 128>}]} {
    %c0 = arith.constant 0 : index
    %c0_0 = arith.constant 0 : index
    %0 = vector.load %arg1[%c0, %c0_0] : memref<8x512xf32, #tpu.memory_space<vmem>>, vector<8x512xf32>
    %c0_1 = arith.constant 0 : index
    %c0_2 = arith.constant 0 : index
    %1 = vector.load %arg2[%c0_1, %c0_2] : memref<512x128xf32, #tpu.memory_space<vmem>>, vector<512x128xf32>
    %cst = arith.constant dense<0.000000e+00> : vector<8x128xf32>
    %2 = tpu.matmul %0, %1, %cst {dimension_numbers = #tpu.dot_dimension_numbers<[1], [0], [0], [1], [0, 0, 1, 1], [], []>} : vector<8x512xf32>, vector<512x128xf32>, vector<8x128xf32> -> vector<8x128xf32>
    %c0_3 = arith.constant 0 : index
    %c0_4 = arith.constant 0 : index
    %3 = vector.load %arg3[%c0_3, %c0_4] : memref<1x128xf32, #tpu.memory_space<vmem>>, vector<1x128xf32>
    %4 = vector.broadcast %3 : vector<1x128xf32> to vector<8x128xf32>
    %5 = arith.addf %2, %4 : vector<8x128xf32>
    %cst_5 = arith.constant 0.000000e+00 : f32
    %6 = vector.broadcast %cst_5 : f32 to vector<8x128xf32>
    %7 = arith.maximumf %5, %6 : vector<8x128xf32>
    %c0_6 = arith.constant 0 : index
    %c0_7 = arith.constant 0 : index
    %8 = vector.load %arg4[%c0_6, %c0_7] : memref<128x128xf32, #tpu.memory_space<vmem>>, vector<128x128xf32>
    %cst_8 = arith.constant dense<0.000000e+00> : vector<8x128xf32>
    %9 = tpu.matmul %7, %8, %cst_8 {dimension_numbers = #tpu.dot_dimension_numbers<[1], [0], [0], [1], [0, 0, 1, 1], [], []>} : vector<8x128xf32>, vector<128x128xf32>, vector<8x128xf32> -> vector<8x128xf32>
    %c0_9 = arith.constant 0 : index
    %c0_10 = arith.constant 0 : index
    %10 = vector.load %arg5[%c0_9, %c0_10] : memref<1x128xf32, #tpu.memory_space<vmem>>, vector<1x128xf32>
    %11 = vector.broadcast %10 : vector<1x128xf32> to vector<8x128xf32>
    %12 = arith.addf %9, %11 : vector<8x128xf32>
    %cst_11 = arith.constant 0.000000e+00 : f32
    %13 = vector.broadcast %cst_11 : f32 to vector<8x128xf32>
    %14 = arith.maximumf %12, %13 : vector<8x128xf32>
    %c0_12 = arith.constant 0 : index
    %c0_13 = arith.constant 0 : index
    %15 = vector.load %arg6[%c0_12, %c0_13] : memref<128x128xf32, #tpu.memory_space<vmem>>, vector<128x128xf32>
    %cst_14 = arith.constant dense<0.000000e+00> : vector<8x128xf32>
    %16 = tpu.matmul %14, %15, %cst_14 {dimension_numbers = #tpu.dot_dimension_numbers<[1], [0], [0], [1], [0, 0, 1, 1], [], []>} : vector<8x128xf32>, vector<128x128xf32>, vector<8x128xf32> -> vector<8x128xf32>
    %c0_15 = arith.constant 0 : index
    %c0_16 = arith.constant 0 : index
    %17 = vector.load %arg7[%c0_15, %c0_16] : memref<1x128xf32, #tpu.memory_space<vmem>>, vector<1x128xf32>
    %18 = vector.broadcast %17 : vector<1x128xf32> to vector<8x128xf32>
    %19 = arith.addf %16, %18 : vector<8x128xf32>
    %c0_17 = arith.constant 0 : index
    %c0_18 = arith.constant 0 : index
    %20 = vector.load %arg8[%c0_17, %c0_18] : memref<8x128xf32, #tpu.memory_space<vmem>>, vector<8x128xf32>
    tpu.vector_store %arg8[%c0_17, %c0_18], %19 {strides = array<i32>} : memref<8x128xf32, #tpu.memory_space<vmem>>, vector<8x128xf32>,
    return
  }
  func.func @transform_0(%arg0: i32) -> (i32, i32) {
    %c0_i32 = arith.constant 0 : i32
    %c0_i32_0 = arith.constant 0 : i32
    return %arg0, %c0_i32 : i32, i32
  }
  func.func @transform_1(%arg0: i32) -> (i32, i32) {
    %c0_i32 = arith.constant 0 : i32
    %c0_i32_0 = arith.constant 0 : i32
    %c0_i32_1 = arith.constant 0 : i32
    return %c0_i32, %c0_i32_0 : i32, i32
  }
  func.func @transform_2(%arg0: i32) -> (i32, i32) {
    %c0_i32 = arith.constant 0 : i32
    %c0_i32_0 = arith.constant 0 : i32
    %c0_i32_1 = arith.constant 0 : i32
    return %c0_i32, %c0_i32_0 : i32, i32
  }
  func.func @transform_3(%arg0: i32) -> (i32, i32) {
    %c0_i32 = arith.constant 0 : i32
    %c0_i32_0 = arith.constant 0 : i32
    %c0_i32_1 = arith.constant 0 : i32
    return %c0_i32, %c0_i32_0 : i32, i32
  }
  func.func @transform_4(%arg0: i32) -> (i32, i32) {
    %c0_i32 = arith.constant 0 : i32
    %c0_i32_0 = arith.constant 0 : i32
    %c0_i32_1 = arith.constant 0 : i32
    return %c0_i32, %c0_i32_0 : i32, i32
  }
  func.func @transform_5(%arg0: i32) -> (i32, i32) {
    %c0_i32 = arith.constant 0 : i32
    %c0_i32_0 = arith.constant 0 : i32
    %c0_i32_1 = arith.constant 0 : i32
    return %c0_i32, %c0_i32_0 : i32, i32
  }
  func.func @transform_6(%arg0: i32) -> (i32, i32) {
    %c0_i32 = arith.constant 0 : i32
    %c0_i32_0 = arith.constant 0 : i32
    %c0_i32_1 = arith.constant 0 : i32
    return %c0_i32, %c0_i32_0 : i32, i32
  }
  func.func @transform_7(%arg0: i32) -> (i32, i32) {
    %c0_i32 = arith.constant 0 : i32
    %c0_i32_0 = arith.constant 0 : i32
    return %arg0, %c0_i32 : i32, i32
  }
}

</mosaic_0001>

<llo_original>
// kernel: net_forward.3
$region0: #{net_forward.3}
  #allocation0 [shape = 'u32[]', space=smem, size = 0x4, offset = 0x4, fixed_abs, tag = 'smem constant byte address 0x4 - core index']
  #allocation1 [shape = 'u32[72,128]{1,0:T(1,128)}', space=vmem, size = 0x9000, scoped, tag = 'internal scratch']
  %s0 = inlined_call_operand.vmem [shape: f32[392,128], index: 0, kind: input, shape index: {}]
  %s1 = inlined_call_operand.vmem [shape: f32[392,128], index: 1, kind: input, shape index: {}]
  %s2 = inlined_call_operand.vmem [shape: f32[392,128], index: 2, kind: input, shape index: {}]
  %s3 = inlined_call_operand.vmem [shape: f32[392,128], index: 3, kind: input, shape index: {}]
  %s4 = inlined_call_operand.vmem [shape: f32[128,128], index: 4, kind: input, shape index: {}]
  %s5 = inlined_call_operand.vmem [shape: f32[1,128], index: 5, kind: input, shape index: {}]
  %s6 = inlined_call_operand.vmem [shape: f32[392,128], index: 6, kind: output, shape index: {}]
  %s7 = sld [smem:[#allocation0]]
  $region34: #{net_forward.3} parent=0
    _
  %s9 = ssub.s32 1, %s7
  %s10 = scalar_select 0, %s9, %s7
  // Predicated region
  $region2: #{net_forward.3} parent=0 // pred_check
    _
  $region3: #{net_forward.3} parent=0 // pred_check_branch
    %12 = sbr.rel (0) target = $region5
  $region4: #{net_forward.3} parent=0 // pred_region
    _
  $region5: #{net_forward.3} parent=0 // pred_fallthru
    _
  // Predicated region
  $region6: #{net_forward.3} parent=0 // pred_check
    _
  $region7: #{net_forward.3} parent=0 // pred_check_branch
    %14 = sbr.rel (0) target = $region9
  $region8: #{net_forward.3} parent=0 // pred_region
    _
  $region9: #{net_forward.3} parent=0 // pred_fallthru
    _
  // Predicated region
  $region10: #{net_forward.3} parent=0 // pred_check
    _
  $region11: #{net_forward.3} parent=0 // pred_check_branch
    %16 = sbr.rel (0) target = $region13
  $region12: #{net_forward.3} parent=0 // pred_region
    _
  $region13: #{net_forward.3} parent=0 // pred_fallthru
    _
  // Predicated region
  $region14: #{net_forward.3} parent=0 // pred_check
    _
  $region15: #{net_forward.3} parent=0 // pred_check_branch
    %18 = sbr.rel (0) target = $region17
  $region16: #{net_forward.3} parent=0 // pred_region
    _
  $region17: #{net_forward.3} parent=0 // pred_fallthru
    _
  // Predicated region
  $region18: #{net_forward.3} parent=0 // pred_check
    _
  $region19: #{net_forward.3} parent=0 // pred_check_branch
    %20 = sbr.rel (0) target = $region21
  $region20: #{net_forward.3} parent=0 // pred_region
    _
  $region21: #{net_forward.3} parent=0 // pred_fallthru
    _
  // Predicated region
  $region22: #{net_forward.3} parent=0 // pred_check
    _
  $region23: #{net_forward.3} parent=0 // pred_check_branch
    %22 = sbr.rel (0) target = $region25
  $region24: #{net_forward.3} parent=0 // pred_region
    _
  $region25: #{net_forward.3} parent=0 // pred_fallthru
    _
  %v23 = vld [vmem:[%s4] sm:$0xff]
  %v24 = vld [vmem:[%s4 + $0x8] sm:$0xff]
  %v25 = vld [vmem:[%s4 + $0x10] sm:$0xff]
  %v26 = vld [vmem:[%s4 + $0x18] sm:$0xff]
  %v27 = vld [vmem:[%s4 + $0x20] sm:$0xff]
  %v28 = vld [vmem:[%s4 + $0x28] sm:$0xff]
  %v29 = vld [vmem:[%s4 + $0x30] sm:$0xff]
  %v30 = vld [vmem:[%s4 + $0x38] sm:$0xff]
  %v31 = vld [vmem:[%s4 + $0x40] sm:$0xff]
  %v32 = vld [vmem:[%s4 + $0x48] sm:$0xff]
  %v33 = vld [vmem:[%s4 + $0x50] sm:$0xff]
  %v34 = vld [vmem:[%s4 + $0x58] sm:$0xff]
  %v35 = vld [vmem:[%s4 + $0x60] sm:$0xff]
  %v36 = vld [vmem:[%s4 + $0x68] sm:$0xff]
  %v37 = vld [vmem:[%s4 + $0x70] sm:$0xff]
  %v38 = vld [vmem:[%s4 + $0x78] sm:$0xff]
  %v39 = vld [vmem:[%s0] sm:$0xff]
  %v40 = vld [vmem:[%s0 + $0x8] sm:$0xff]
  %v41 = vld [vmem:[%s0 + $0x10] sm:$0xff]
  %v42 = vld [vmem:[%s0 + $0x18] sm:$0xff]
  %v43 = vld [vmem:[%s0 + $0x20] sm:$0xff]
  %v44 = vld [vmem:[%s0 + $0x28] sm:$0xff]
  %v45 = vld [vmem:[%s0 + $0x30] sm:$0xff]
  %v46 = vld [vmem:[%s0 + $0x38] sm:$0xff]
  %v47 = vld [vmem:[%s0 + $0x40] sm:$0xff]
  %v48 = vld [vmem:[%s0 + $0x48] sm:$0xff]
  %v49 = vld [vmem:[%s0 + $0x50] sm:$0xff]
  %v50 = vld [vmem:[%s0 + $0x58] sm:$0xff]
  %v51 = vld [vmem:[%s0 + $0x60] sm:$0xff]
  %v52 = vld [vmem:[%s0 + $0x68] sm:$0xff]
  %v53 = vld [vmem:[%s0 + $0x70] sm:$0xff]
  %v54 = vld [vmem:[%s0 + $0x78] sm:$0xff]
  %v55 = vld [vmem:[%s0 + $0x80] sm:$0xff]
  %v56 = vld [vmem:[%s0 + $0x88] sm:$0xff]
  %v57 = vld [vmem:[%s0 + $0x90] sm:$0xff]
  %v58 = vld [vmem:[%s0 + $0x98] sm:$0xff]
  %v59 = vld [vmem:[%s0 + $0xa0] sm:$0xff]
  %v60 = vld [vmem:[%s0 + $0xa8] sm:$0xff]
  %v61 = vld [vmem:[%s0 + $0xb0] sm:$0xff]
  %v62 = vld [vmem:[%s0 + $0xb8] sm:$0xff]
  %v63 = vld [vmem:[%s0 + $0xc0] sm:$0xff]
  %v64 = vld [vmem:[%s0 + $0xc8] sm:$0xff]
  %v65 = vld [vmem:[%s0 + $0xd0] sm:$0xff]
  %v66 = vld [vmem:[%s0 + $0xd8] sm:$0xff]
  %v67 = vld [vmem:[%s0 + $0xe0] sm:$0xff]
  %v68 = vld [vmem:[%s0 + $0xe8] sm:$0xff]
  %v69 = vld [vmem:[%s0 + $0xf0] sm:$0xff]
  %v70 = vld [vmem:[%s0 + $0xf8] sm:$0xff]
  %v71 = vld [vmem:[%s0 + $0x100] sm:$0xff]
  %v72 = vld [vmem:[%s0 + $0x108] sm:$0xff]
  %v73 = vld [vmem:[%s0 + $0x110] sm:$0xff]
  %v74 = vld [vmem:[%s0 + $0x118] sm:$0xff]
  %v75 = vld [vmem:[%s0 + $0x120] sm:$0xff]
  %v76 = vld [vmem:[%s0 + $0x128] sm:$0xff]
  %v77 = vld [vmem:[%s0 + $0x130] sm:$0xff]
  %v78 = vld [vmem:[%s0 + $0x138] sm:$0xff]
  %v79 = vld [vmem:[%s0 + $0x140] sm:$0xff]
  %v80 = vld [vmem:[%s0 + $0x148] sm:$0xff]
  %v81 = vld [vmem:[%s0 + $0x150] sm:$0xff]
  %v82 = vld [vmem:[%s0 + $0x158] sm:$0xff]
  %v83 = vld [vmem:[%s0 + $0x160] sm:$0xff]
  %v84 = vld [vmem:[%s0 + $0x168] sm:$0xff]
  %v85 = vld [vmem:[%s0 + $0x170] sm:$0xff]
  %v86 = vld [vmem:[%s0 + $0x178] sm:$0xff]
  %v87 = vld [vmem:[%s0 + $0x180] sm:$0xff]
  %88 = vmatpush.msra.mxu0 %v38
  %89 = vmatpush.msra.mxu0 %v37
  %90 = vmatpush.msra.mxu0 %v36
  %91 = vmatpush.msra.mxu0 %v35
  %92 = vmatpush.msra.mxu0 %v34
  %93 = vmatpush.msra.mxu0 %v33
  %94 = vmatpush.msra.mxu0 %v32
  %95 = vmatpush.msra.mxu0 %v31
  %96 = vmatpush.msra.mxu0 %v30
  %97 = vmatpush.msra.mxu0 %v29
  %98 = vmatpush.msra.mxu0 %v28
  %99 = vmatpush.msra.mxu0 %v27
  %100 = vmatpush.msra.mxu0 %v26
  %101 = vmatpush.msra.mxu0 %v25
  %102 = vmatpush.msra.mxu0 %v24
  %103 = vmatpush.msra.mxu0 %v23
  %104 = vmatmul.f32.gmra.mxu0 %v39
  %v105 = vpop.f32.mrf.mxu0
  %v106 = vadd.f32 0.0, %v105
  %107 = vmatmul.f32.gmra.mxu0 %v40
  %v108 = vpop.f32.mrf.mxu0
  %v109 = vadd.f32 0.0, %v108
  %110 = vmatmul.f32.gmra.mxu0 %v41
  %v111 = vpop.f32.mrf.mxu0
  %v112 = vadd.f32 0.0, %v111
  %113 = vmatmul.f32.gmra.mxu0 %v42
  %v114 = vpop.f32.mrf.mxu0
  %v115 = vadd.f32 0.0, %v114
  %116 = vmatmul.f32.gmra.mxu0 %v43
  %v117 = vpop.f32.mrf.mxu0
  %v118 = vadd.f32 0.0, %v117
  %119 = vmatmul.f32.gmra.mxu0 %v44
  %v120 = vpop.f32.mrf.mxu0
  %v121 = vadd.f32 0.0, %v120
  %122 = vmatmul.f32.gmra.mxu0 %v45
  %v123 = vpop.f32.mrf.mxu0
  %v124 = vadd.f32 0.0, %v123
  %125 = vmatmul.f32.gmra.mxu0 %v46
  %v126 = vpop.f32.mrf.mxu0
  %v127 = vadd.f32 0.0, %v126
  %128 = vmatmul.f32.gmra.mxu0 %v47
  %v129 = vpop.f32.mrf.mxu0
  %v130 = vadd.f32 0.0, %v129
  %131 = vmatmul.f32.gmra.mxu0 %v48
  %v132 = vpop.f32.mrf.mxu0
  %v133 = vadd.f32 0.0, %v132
  %134 = vmatmul.f32.gmra.mxu0 %v49
  %v135 = vpop.f32.mrf.mxu0
  %v136 = vadd.f32 0.0, %v135
  %137 = vmatmul.f32.gmra.mxu0 %v50
  %v138 = vpop.f32.mrf.mxu0
  %v139 = vadd.f32 0.0, %v138
  %140 = vmatmul.f32.gmra.mxu0 %v51
  %v141 = vpop.f32.mrf.mxu0
  %v142 = vadd.f32 0.0, %v141
  %143 = vmatmul.f32.gmra.mxu0 %v52
  %v144 = vpop.f32.mrf.mxu0
  %v145 = vadd.f32 0.0, %v144
  %146 = vmatmul.f32.gmra.mxu0 %v53
  %v147 = vpop.f32.mrf.mxu0
  %v148 = vadd.f32 0.0, %v147
  %149 = vmatmul.f32.gmra.mxu0 %v54
  %v150 = vpop.f32.mrf.mxu0
  %v151 = vadd.f32 0.0, %v150
  %152 = vmatmul.f32.gmra.mxu0 %v55
  %v153 = vpop.f32.mrf.mxu0
  %v154 = vadd.f32 0.0, %v153
  %155 = vmatmul.f32.gmra.mxu0 %v56
  %v156 = vpop.f32.mrf.mxu0
  %v157 = vadd.f32 0.0, %v156
  %158 = vmatmul.f32.gmra.mxu0 %v57
  %v159 = vpop.f32.mrf.mxu0
  %v160 = vadd.f32 0.0, %v159
  %161 = vmatmul.f32.gmra.mxu0 %v58
  %v162 = vpop.f32.mrf.mxu0
  %v163 = vadd.f32 0.0, %v162
  %164 = vmatmul.f32.gmra.mxu0 %v59
  %v165 = vpop.f32.mrf.mxu0
  %v166 = vadd.f32 0.0, %v165
  %167 = vmatmul.f32.gmra.mxu0 %v60
  %v168 = vpop.f32.mrf.mxu0
  %v169 = vadd.f32 0.0, %v168
  %170 = vmatmul.f32.gmra.mxu0 %v61
  %v171 = vpop.f32.mrf.mxu0
  %v172 = vadd.f32 0.0, %v171
  %173 = vmatmul.f32.gmra.mxu0 %v62
  %v174 = vpop.f32.mrf.mxu0
  %v175 = vadd.f32 0.0, %v174
  %176 = vmatmul.f32.gmra.mxu0 %v63
  %v177 = vpop.f32.mrf.mxu0
  %v178 = vadd.f32 0.0, %v177
  %179 = vmatmul.f32.gmra.mxu0 %v64
  %v180 = vpop.f32.mrf.mxu0
  %v181 = vadd.f32 0.0, %v180
  %182 = vmatmul.f32.gmra.mxu0 %v65
  %v183 = vpop.f32.mrf.mxu0
  %v184 = vadd.f32 0.0, %v183
  %185 = vmatmul.f32.gmra.mxu0 %v66
  %v186 = vpop.f32.mrf.mxu0
  %v187 = vadd.f32 0.0, %v186
  %188 = vmatmul.f32.gmra.mxu0 %v67
  %v189 = vpop.f32.mrf.mxu0
  %v190 = vadd.f32 0.0, %v189
  %191 = vmatmul.f32.gmra.mxu0 %v68
  %v192 = vpop.f32.mrf.mxu0
  %v193 = vadd.f32 0.0, %v192
  %194 = vmatmul.f32.gmra.mxu0 %v69
  %v195 = vpop.f32.mrf.mxu0
  %v196 = vadd.f32 0.0, %v195
  %197 = vmatmul.f32.gmra.mxu0 %v70
  %v198 = vpop.f32.mrf.mxu0
  %v199 = vadd.f32 0.0, %v198
  %200 = vmatmul.f32.gmra.mxu0 %v71
  %v201 = vpop.f32.mrf.mxu0
  %v202 = vadd.f32 0.0, %v201
  %203 = vmatmul.f32.gmra.mxu0 %v72
  %v204 = vpop.f32.mrf.mxu0
  %v205 = vadd.f32 0.0, %v204
  %206 = vmatmul.f32.gmra.mxu0 %v73
  %v207 = vpop.f32.mrf.mxu0
  %v208 = vadd.f32 0.0, %v207
  %209 = vmatmul.f32.gmra.mxu0 %v74
  %v210 = vpop.f32.mrf.mxu0
  %v211 = vadd.f32 0.0, %v210
  %212 = vmatmul.f32.gmra.mxu0 %v75
  %v213 = vpop.f32.mrf.mxu0
  %v214 = vadd.f32 0.0, %v213
  %215 = vmatmul.f32.gmra.mxu0 %v76
  %v216 = vpop.f32.mrf.mxu0
  %v217 = vadd.f32 0.0, %v216
  %218 = vmatmul.f32.gmra.mxu0 %v77
  %v219 = vpop.f32.mrf.mxu0
  %v220 = vadd.f32 0.0, %v219
  %221 = vmatmul.f32.gmra.mxu0 %v78
  %v222 = vpop.f32.mrf.mxu0
  %v223 = vadd.f32 0.0, %v222
  %224 = vmatmul.f32.gmra.mxu0 %v79
  %v225 = vpop.f32.mrf.mxu0
  %v226 = vadd.f32 0.0, %v225
  %227 = vmatmul.f32.gmra.mxu0 %v80
  %v228 = vpop.f32.mrf.mxu0
  %v229 = vadd.f32 0.0, %v228
  %230 = vmatmul.f32.gmra.mxu0 %v81
  %v231 = vpop.f32.mrf.mxu0
  %v232 = vadd.f32 0.0, %v231
  %233 = vmatmul.f32.gmra.mxu0 %v82
  %v234 = vpop.f32.mrf.mxu0
  %v235 = vadd.f32 0.0, %v234
  %236 = vmatmul.f32.gmra.mxu0 %v83
  %v237 = vpop.f32.mrf.mxu0
  %v238 = vadd.f32 0.0, %v237
  %239 = vmatmul.f32.gmra.mxu0 %v84
  %v240 = vpop.f32.mrf.mxu0
  %v241 = vadd.f32 0.0, %v240
  %242 = vmatmul.f32.gmra.mxu0 %v85
  %v243 = vpop.f32.mrf.mxu0
  %v244 = vadd.f32 0.0, %v243
  %245 = vmatmul.f32.gmra.mxu0 %v86
  %v246 = vpop.f32.mrf.mxu0
  %v247 = vadd.f32 0.0, %v246
  %248 = vmatmul.f32.gmra.mxu0 %v87
  %v249 = vpop.f32.mrf.mxu0
  %v250 = vadd.f32 0.0, %v249
  %251 = vdwg.mxu0
  %v252 = vld [vmem:[%s1] sm:$0xff]
  %v253 = vld [vmem:[%s1 + $0x8] sm:$0xff]
  %v254 = vld [vmem:[%s1 + $0x10] sm:$0xff]
  %v255 = vld [vmem:[%s1 + $0x18] sm:$0xff]
  %v256 = vld [vmem:[%s1 + $0x20] sm:$0xff]
  %v257 = vld [vmem:[%s1 + $0x28] sm:$0xff]
  %v258 = vld [vmem:[%s1 + $0x30] sm:$0xff]
  %v259 = vld [vmem:[%s1 + $0x38] sm:$0xff]
  %v260 = vld [vmem:[%s1 + $0x40] sm:$0xff]
  %v261 = vld [vmem:[%s1 + $0x48] sm:$0xff]
  %v262 = vld [vmem:[%s1 + $0x50] sm:$0xff]
  %v263 = vld [vmem:[%s1 + $0x58] sm:$0xff]
  %v264 = vld [vmem:[%s1 + $0x60] sm:$0xff]
  %v265 = vld [vmem:[%s1 + $0x68] sm:$0xff]
  %v266 = vld [vmem:[%s1 + $0x70] sm:$0xff]
  %v267 = vld [vmem:[%s1 + $0x78] sm:$0xff]
  %v268 = vld [vmem:[%s1 + $0x80] sm:$0xff]
  %v269 = vld [vmem:[%s1 + $0x88] sm:$0xff]
  %v270 = vld [vmem:[%s1 + $0x90] sm:$0xff]
  %v271 = vld [vmem:[%s1 + $0x98] sm:$0xff]
  %v272 = vld [vmem:[%s1 + $0xa0] sm:$0xff]
  %v273 = vld [vmem:[%s1 + $0xa8] sm:$0xff]
  %v274 = vld [vmem:[%s1 + $0xb0] sm:$0xff]
  %v275 = vld [vmem:[%s1 + $0xb8] sm:$0xff]
  %v276 = vld [vmem:[%s1 + $0xc0] sm:$0xff]
  %v277 = vld [vmem:[%s1 + $0xc8] sm:$0xff]
  %v278 = vld [vmem:[%s1 + $0xd0] sm:$0xff]
  %v279 = vld [vmem:[%s1 + $0xd8] sm:$0xff]
  %v280 = vld [vmem:[%s1 + $0xe0] sm:$0xff]
  %v281 = vld [vmem:[%s1 + $0xe8] sm:$0xff]
  %v282 = vld [vmem:[%s1 + $0xf0] sm:$0xff]
  %v283 = vld [vmem:[%s1 + $0xf8] sm:$0xff]
  %v284 = vld [vmem:[%s1 + $0x100] sm:$0xff]
  %v285 = vld [vmem:[%s1 + $0x108] sm:$0xff]
  %v286 = vld [vmem:[%s1 + $0x110] sm:$0xff]
  %v287 = vld [vmem:[%s1 + $0x118] sm:$0xff]
  %v288 = vld [vmem:[%s1 + $0x120] sm:$0xff]
  %v289 = vld [vmem:[%s1 + $0x128] sm:$0xff]
  %v290 = vld [vmem:[%s1 + $0x130] sm:$0xff]
  %v291 = vld [vmem:[%s1 + $0x138] sm:$0xff]
  %v292 = vld [vmem:[%s1 + $0x140] sm:$0xff]
  %v293 = vld [vmem:[%s1 + $0x148] sm:$0xff]
  %v294 = vld [vmem:[%s1 + $0x150] sm:$0xff]
  %v295 = vld [vmem:[%s1 + $0x158] sm:$0xff]
  %v296 = vld [vmem:[%s1 + $0x160] sm:$0xff]
  %v297 = vld [vmem:[%s1 + $0x168] sm:$0xff]
  %v298 = vld [vmem:[%s1 + $0x170] sm:$0xff]
  %v299 = vld [vmem:[%s1 + $0x178] sm:$0xff]
  %v300 = vld [vmem:[%s1 + $0x180] sm:$0xff]
  %301 = vmatpush.msra.mxu0 %v38
  %302 = vmatpush.msra.mxu0 %v37
  %303 = vmatpush.msra.mxu0 %v36
  %304 = vmatpush.msra.mxu0 %v35
  %305 = vmatpush.msra.mxu0 %v34
  %306 = vmatpush.msra.mxu0 %v33
  %307 = vmatpush.msra.mxu0 %v32
  %308 = vmatpush.msra.mxu0 %v31
  %309 = vmatpush.msra.mxu0 %v30
  %310 = vmatpush.msra.mxu0 %v29
  %311 = vmatpush.msra.mxu0 %v28
  %312 = vmatpush.msra.mxu0 %v27
  %313 = vmatpush.msra.mxu0 %v26
  %314 = vmatpush.msra.mxu0 %v25
  %315 = vmatpush.msra.mxu0 %v24
  %316 = vmatpush.msra.mxu0 %v23
  %317 = vmatmul.f32.gmra.mxu0 %v252
  %v318 = vpop.f32.mrf.mxu0
  %v319 = vadd.f32 0.0, %v318
  %320 = vmatmul.f32.gmra.mxu0 %v253
  %v321 = vpop.f32.mrf.mxu0
  %v322 = vadd.f32 0.0, %v321
  %323 = vmatmul.f32.gmra.mxu0 %v254
  %v324 = vpop.f32.mrf.mxu0
  %v325 = vadd.f32 0.0, %v324
  %326 = vmatmul.f32.gmra.mxu0 %v255
  %v327 = vpop.f32.mrf.mxu0
  %v328 = vadd.f32 0.0, %v327
  %329 = vmatmul.f32.gmra.mxu0 %v256
  %v330 = vpop.f32.mrf.mxu0
  %v331 = vadd.f32 0.0, %v330
  %332 = vmatmul.f32.gmra.mxu0 %v257
  %v333 = vpop.f32.mrf.mxu0
  %v334 = vadd.f32 0.0, %v333
  %335 = vmatmul.f32.gmra.mxu0 %v258
  %v336 = vpop.f32.mrf.mxu0
  %v337 = vadd.f32 0.0, %v336
  %338 = vmatmul.f32.gmra.mxu0 %v259
  %v339 = vpop.f32.mrf.mxu0
  %v340 = vadd.f32 0.0, %v339
  %341 = vmatmul.f32.gmra.mxu0 %v260
  %v342 = vpop.f32.mrf.mxu0
  %v343 = vadd.f32 0.0, %v342
  %344 = vmatmul.f32.gmra.mxu0 %v261
  %v345 = vpop.f32.mrf.mxu0
  %v346 = vadd.f32 0.0, %v345
  %347 = vmatmul.f32.gmra.mxu0 %v262
  %v348 = vpop.f32.mrf.mxu0
  %v349 = vadd.f32 0.0, %v348
  %350 = vmatmul.f32.gmra.mxu0 %v263
  %v351 = vpop.f32.mrf.mxu0
  %v352 = vadd.f32 0.0, %v351
  %353 = vmatmul.f32.gmra.mxu0 %v264
  %v354 = vpop.f32.mrf.mxu0
  %v355 = vadd.f32 0.0, %v354
  %356 = vmatmul.f32.gmra.mxu0 %v265
  %v357 = vpop.f32.mrf.mxu0
  %v358 = vadd.f32 0.0, %v357
  %359 = vmatmul.f32.gmra.mxu0 %v266
  %v360 = vpop.f32.mrf.mxu0
  %v361 = vadd.f32 0.0, %v360
  %362 = vmatmul.f32.gmra.mxu0 %v267
  %v363 = vpop.f32.mrf.mxu0
  %v364 = vadd.f32 0.0, %v363
  %365 = vmatmul.f32.gmra.mxu0 %v268
  %v366 = vpop.f32.mrf.mxu0
  %v367 = vadd.f32 0.0, %v366
  %368 = vmatmul.f32.gmra.mxu0 %v269
  %v369 = vpop.f32.mrf.mxu0
  %v370 = vadd.f32 0.0, %v369
  %371 = vmatmul.f32.gmra.mxu0 %v270
  %v372 = vpop.f32.mrf.mxu0
  %v373 = vadd.f32 0.0, %v372
  %374 = vmatmul.f32.gmra.mxu0 %v271
  %v375 = vpop.f32.mrf.mxu0
  %v376 = vadd.f32 0.0, %v375
  %377 = vmatmul.f32.gmra.mxu0 %v272
  %v378 = vpop.f32.mrf.mxu0
  %v379 = vadd.f32 0.0, %v378
  %380 = vmatmul.f32.gmra.mxu0 %v273
  %v381 = vpop.f32.mrf.mxu0
  %v382 = vadd.f32 0.0, %v381
  %383 = vmatmul.f32.gmra.mxu0 %v274
  %v384 = vpop.f32.mrf.mxu0
  %v385 = vadd.f32 0.0, %v384
  %386 = vmatmul.f32.gmra.mxu0 %v275
  %v387 = vpop.f32.mrf.mxu0
  %v388 = vadd.f32 0.0, %v387
  %389 = vmatmul.f32.gmra.mxu0 %v276
  %v390 = vpop.f32.mrf.mxu0
  %v391 = vadd.f32 0.0, %v390
  %392 = vmatmul.f32.gmra.mxu0 %v277
  %v393 = vpop.f32.mrf.mxu0
  %v394 = vadd.f32 0.0, %v393
  %395 = vmatmul.f32.gmra.mxu0 %v278
  %v396 = vpop.f32.mrf.mxu0
  %v397 = vadd.f32 0.0, %v396
  %398 = vmatmul.f32.gmra.mxu0 %v279
  %v399 = vpop.f32.mrf.mxu0
  %v400 = vadd.f32 0.0, %v399
  %401 = vmatmul.f32.gmra.mxu0 %v280
  %v402 = vpop.f32.mrf.mxu0
  %v403 = vadd.f32 0.0, %v402
  %404 = vmatmul.f32.gmra.mxu0 %v281
  %v405 = vpop.f32.mrf.mxu0
  %v406 = vadd.f32 0.0, %v405
  %407 = vmatmul.f32.gmra.mxu0 %v282
  %v408 = vpop.f32.mrf.mxu0
  %v409 = vadd.f32 0.0, %v408
  %410 = vmatmul.f32.gmra.mxu0 %v283
  %v411 = vpop.f32.mrf.mxu0
  %v412 = vadd.f32 0.0, %v411
  %413 = vmatmul.f32.gmra.mxu0 %v284
  %v414 = vpop.f32.mrf.mxu0
  %v415 = vadd.f32 0.0, %v414
  %416 = vmatmul.f32.gmra.mxu0 %v285
  %v417 = vpop.f32.mrf.mxu0
  %v418 = vadd.f32 0.0, %v417
  %419 = vmatmul.f32.gmra.mxu0 %v286
  %v420 = vpop.f32.mrf.mxu0
  %v421 = vadd.f32 0.0, %v420
  %422 = vmatmul.f32.gmra.mxu0 %v287
  %v423 = vpop.f32.mrf.mxu0
  %v424 = vadd.f32 0.0, %v423
  %425 = vmatmul.f32.gmra.mxu0 %v288
  %v426 = vpop.f32.mrf.mxu0
  %v427 = vadd.f32 0.0, %v426
  %428 = vmatmul.f32.gmra.mxu0 %v289
  %v429 = vpop.f32.mrf.mxu0
  %v430 = vadd.f32 0.0, %v429
  %431 = vmatmul.f32.gmra.mxu0 %v290
  %v432 = vpop.f32.mrf.mxu0
  %v433 = vadd.f32 0.0, %v432
  %434 = vmatmul.f32.gmra.mxu0 %v291
  %v435 = vpop.f32.mrf.mxu0
  %v436 = vadd.f32 0.0, %v435
  %437 = vmatmul.f32.gmra.mxu0 %v292
  %v438 = vpop.f32.mrf.mxu0
  %v439 = vadd.f32 0.0, %v438
  %440 = vmatmul.f32.gmra.mxu0 %v293
  %v441 = vpop.f32.mrf.mxu0
  %v442 = vadd.f32 0.0, %v441
  %443 = vmatmul.f32.gmra.mxu0 %v294
  %v444 = vpop.f32.mrf.mxu0
  %v445 = vadd.f32 0.0, %v444
  %446 = vmatmul.f32.gmra.mxu0 %v295
  %v447 = vpop.f32.mrf.mxu0
  %v448 = vadd.f32 0.0, %v447
  %449 = vmatmul.f32.gmra.mxu0 %v296
  %v450 = vpop.f32.mrf.mxu0
  %v451 = vadd.f32 0.0, %v450
  %452 = vmatmul.f32.gmra.mxu0 %v297
  %v453 = vpop.f32.mrf.mxu0
  %v454 = vadd.f32 0.0, %v453
  %455 = vmatmul.f32.gmra.mxu0 %v298
  %v456 = vpop.f32.mrf.mxu0
  %v457 = vadd.f32 0.0, %v456
  %458 = vmatmul.f32.gmra.mxu0 %v299
  %v459 = vpop.f32.mrf.mxu0
  %v460 = vadd.f32 0.0, %v459
  %461 = vmatmul.f32.gmra.mxu0 %v300
  %v462 = vpop.f32.mrf.mxu0
  %v463 = vadd.f32 0.0, %v462
  %464 = vdwg.mxu0
  %v465 = vld [vmem:[%s2] sm:$0xff]
  %v466 = vld [vmem:[%s2 + $0x8] sm:$0xff]
  %v467 = vld [vmem:[%s2 + $0x10] sm:$0xff]
  %v468 = vld [vmem:[%s2 + $0x18] sm:$0xff]
  %v469 = vld [vmem:[%s2 + $0x20] sm:$0xff]
  %v470 = vld [vmem:[%s2 + $0x28] sm:$0xff]
  %v471 = vld [vmem:[%s2 + $0x30] sm:$0xff]
  %v472 = vld [vmem:[%s2 + $0x38] sm:$0xff]
  %v473 = vld [vmem:[%s2 + $0x40] sm:$0xff]
  %v474 = vld [vmem:[%s2 + $0x48] sm:$0xff]
  %v475 = vld [vmem:[%s2 + $0x50] sm:$0xff]
  %v476 = vld [vmem:[%s2 + $0x58] sm:$0xff]
  %v477 = vld [vmem:[%s2 + $0x60] sm:$0xff]
  %v478 = vld [vmem:[%s2 + $0x68] sm:$0xff]
  %v479 = vld [vmem:[%s2 + $0x70] sm:$0xff]
  %v480 = vld [vmem:[%s2 + $0x78] sm:$0xff]
  %v481 = vld [vmem:[%s2 + $0x80] sm:$0xff]
  %v482 = vld [vmem:[%s2 + $0x88] sm:$0xff]
  %v483 = vld [vmem:[%s2 + $0x90] sm:$0xff]
  %v484 = vld [vmem:[%s2 + $0x98] sm:$0xff]
  %v485 = vld [vmem:[%s2 + $0xa0] sm:$0xff]
  %v486 = vld [vmem:[%s2 + $0xa8] sm:$0xff]
  %v487 = vld [vmem:[%s2 + $0xb0] sm:$0xff]
  %v488 = vld [vmem:[%s2 + $0xb8] sm:$0xff]
  %v489 = vld [vmem:[%s2 + $0xc0] sm:$0xff]
  %v490 = vld [vmem:[%s2 + $0xc8] sm:$0xff]
  %v491 = vld [vmem:[%s2 + $0xd0] sm:$0xff]
  %v492 = vld [vmem:[%s2 + $0xd8] sm:$0xff]
  %v493 = vld [vmem:[%s2 + $0xe0] sm:$0xff]
  %v494 = vld [vmem:[%s2 + $0xe8] sm:$0xff]
  %v495 = vld [vmem:[%s2 + $0xf0] sm:$0xff]
  %v496 = vld [vmem:[%s2 + $0xf8] sm:$0xff]
  %v497 = vld [vmem:[%s2 + $0x100] sm:$0xff]
  %v498 = vld [vmem:[%s2 + $0x108] sm:$0xff]
  %v499 = vld [vmem:[%s2 + $0x110] sm:$0xff]
  %v500 = vld [vmem:[%s2 + $0x118] sm:$0xff]
  %v501 = vld [vmem:[%s2 + $0x120] sm:$0xff]
  %v502 = vld [vmem:[%s2 + $0x128] sm:$0xff]
  %v503 = vld [vmem:[%s2 + $0x130] sm:$0xff]
  %v504 = vld [vmem:[%s2 + $0x138] sm:$0xff]
  %v505 = vld [vmem:[%s2 + $0x140] sm:$0xff]
  %v506 = vld [vmem:[%s2 + $0x148] sm:$0xff]
  %v507 = vld [vmem:[%s2 + $0x150] sm:$0xff]
  %v508 = vld [vmem:[%s2 + $0x158] sm:$0xff]
  %v509 = vld [vmem:[%s2 + $0x160] sm:$0xff]
  %v510 = vld [vmem:[%s2 + $0x168] sm:$0xff]
  %v511 = vld [vmem:[%s2 + $0x170] sm:$0xff]
  %v512 = vld [vmem:[%s2 + $0x178] sm:$0xff]
  %v513 = vld [vmem:[%s2 + $0x180] sm:$0xff]
  %514 = vmatpush.msra.mxu0 %v38
  %515 = vmatpush.msra.mxu0 %v37
  %516 = vmatpush.msra.mxu0 %v36
  %517 = vmatpush.msra.mxu0 %v35
  %518 = vmatpush.msra.mxu0 %v34
  %519 = vmatpush.msra.mxu0 %v33
  %520 = vmatpush.msra.mxu0 %v32
  %521 = vmatpush.msra.mxu0 %v31
  %522 = vmatpush.msra.mxu0 %v30
  %523 = vmatpush.msra.mxu0 %v29
  %524 = vmatpush.msra.mxu0 %v28
  %525 = vmatpush.msra.mxu0 %v27
  %526 = vmatpush.msra.mxu0 %v26
  %527 = vmatpush.msra.mxu0 %v25
  %528 = vmatpush.msra.mxu0 %v24
  %529 = vmatpush.msra.mxu0 %v23
  %530 = vmatmul.f32.gmra.mxu0 %v465
  %v531 = vpop.f32.mrf.mxu0
  %v532 = vadd.f32 0.0, %v531
  %533 = vmatmul.f32.gmra.mxu0 %v466
  %v534 = vpop.f32.mrf.mxu0
  %v535 = vadd.f32 0.0, %v534
  %536 = vmatmul.f32.gmra.mxu0 %v467
  %v537 = vpop.f32.mrf.mxu0
  %v538 = vadd.f32 0.0, %v537
  %539 = vmatmul.f32.gmra.mxu0 %v468
  %v540 = vpop.f32.mrf.mxu0
  %v541 = vadd.f32 0.0, %v540
  %542 = vmatmul.f32.gmra.mxu0 %v469
  %v543 = vpop.f32.mrf.mxu0
  %v544 = vadd.f32 0.0, %v543
  %545 = vmatmul.f32.gmra.mxu0 %v470
  %v546 = vpop.f32.mrf.mxu0
  %v547 = vadd.f32 0.0, %v546
  %548 = vmatmul.f32.gmra.mxu0 %v471
  %v549 = vpop.f32.mrf.mxu0
  %v550 = vadd.f32 0.0, %v549
  %551 = vmatmul.f32.gmra.mxu0 %v472
  %v552 = vpop.f32.mrf.mxu0
  %v553 = vadd.f32 0.0, %v552
  %554 = vmatmul.f32.gmra.mxu0 %v473
  %v555 = vpop.f32.mrf.mxu0
  %v556 = vadd.f32 0.0, %v555
  %557 = vmatmul.f32.gmra.mxu0 %v474
  %v558 = vpop.f32.mrf.mxu0
  %v559 = vadd.f32 0.0, %v558
  %560 = vmatmul.f32.gmra.mxu0 %v475
  %v561 = vpop.f32.mrf.mxu0
  %v562 = vadd.f32 0.0, %v561
  %563 = vmatmul.f32.gmra.mxu0 %v476
  %v564 = vpop.f32.mrf.mxu0
  %v565 = vadd.f32 0.0, %v564
  %566 = vmatmul.f32.gmra.mxu0 %v477
  %v567 = vpop.f32.mrf.mxu0
  %v568 = vadd.f32 0.0, %v567
  %569 = vmatmul.f32.gmra.mxu0 %v478
  %v570 = vpop.f32.mrf.mxu0
  %v571 = vadd.f32 0.0, %v570
  %572 = vmatmul.f32.gmra.mxu0 %v479
  %v573 = vpop.f32.mrf.mxu0
  %v574 = vadd.f32 0.0, %v573
  %575 = vmatmul.f32.gmra.mxu0 %v480
  %v576 = vpop.f32.mrf.mxu0
  %v577 = vadd.f32 0.0, %v576
  %578 = vmatmul.f32.gmra.mxu0 %v481
  %v579 = vpop.f32.mrf.mxu0
  %v580 = vadd.f32 0.0, %v579
  %581 = vmatmul.f32.gmra.mxu0 %v482
  %v582 = vpop.f32.mrf.mxu0
  %v583 = vadd.f32 0.0, %v582
  %584 = vmatmul.f32.gmra.mxu0 %v483
  %v585 = vpop.f32.mrf.mxu0
  %v586 = vadd.f32 0.0, %v585
  %587 = vmatmul.f32.gmra.mxu0 %v484
  %v588 = vpop.f32.mrf.mxu0
  %v589 = vadd.f32 0.0, %v588
  %590 = vmatmul.f32.gmra.mxu0 %v485
  %v591 = vpop.f32.mrf.mxu0
  %v592 = vadd.f32 0.0, %v591
  %593 = vmatmul.f32.gmra.mxu0 %v486
  %v594 = vpop.f32.mrf.mxu0
  %v595 = vadd.f32 0.0, %v594
  %596 = vmatmul.f32.gmra.mxu0 %v487
  %v597 = vpop.f32.mrf.mxu0
  %v598 = vadd.f32 0.0, %v597
  %599 = vmatmul.f32.gmra.mxu0 %v488
  %v600 = vpop.f32.mrf.mxu0
  %v601 = vadd.f32 0.0, %v600
  %602 = vmatmul.f32.gmra.mxu0 %v489
  %v603 = vpop.f32.mrf.mxu0
  %v604 = vadd.f32 0.0, %v603
  %605 = vmatmul.f32.gmra.mxu0 %v490
  %v606 = vpop.f32.mrf.mxu0
  %v607 = vadd.f32 0.0, %v606
  %608 = vmatmul.f32.gmra.mxu0 %v491
  %v609 = vpop.f32.mrf.mxu0
  %v610 = vadd.f32 0.0, %v609
  %611 = vmatmul.f32.gmra.mxu0 %v492
  %v612 = vpop.f32.mrf.mxu0
  %v613 = vadd.f32 0.0, %v612
  %614 = vmatmul.f32.gmra.mxu0 %v493
  %v615 = vpop.f32.mrf.mxu0
  %v616 = vadd.f32 0.0, %v615
  %617 = vmatmul.f32.gmra.mxu0 %v494
  %v618 = vpop.f32.mrf.mxu0
  %v619 = vadd.f32 0.0, %v618
  %620 = vmatmul.f32.gmra.mxu0 %v495
  %v621 = vpop.f32.mrf.mxu0
  %v622 = vadd.f32 0.0, %v621
  %623 = vmatmul.f32.gmra.mxu0 %v496
  %v624 = vpop.f32.mrf.mxu0
  %v625 = vadd.f32 0.0, %v624
  %626 = vmatmul.f32.gmra.mxu0 %v497
  %v627 = vpop.f32.mrf.mxu0
  %v628 = vadd.f32 0.0, %v627
  %629 = vmatmul.f32.gmra.mxu0 %v498
  %v630 = vpop.f32.mrf.mxu0
  %v631 = vadd.f32 0.0, %v630
  %632 = vmatmul.f32.gmra.mxu0 %v499
  %v633 = vpop.f32.mrf.mxu0
  %v634 = vadd.f32 0.0, %v633
  %635 = vmatmul.f32.gmra.mxu0 %v500
  %v636 = vpop.f32.mrf.mxu0
  %v637 = vadd.f32 0.0, %v636
  %638 = vmatmul.f32.gmra.mxu0 %v501
  %v639 = vpop.f32.mrf.mxu0
  %v640 = vadd.f32 0.0, %v639
  %641 = vmatmul.f32.gmra.mxu0 %v502
  %v642 = vpop.f32.mrf.mxu0
  %v643 = vadd.f32 0.0, %v642
  %644 = vmatmul.f32.gmra.mxu0 %v503
  %v645 = vpop.f32.mrf.mxu0
  %v646 = vadd.f32 0.0, %v645
  %647 = vmatmul.f32.gmra.mxu0 %v504
  %v648 = vpop.f32.mrf.mxu0
  %v649 = vadd.f32 0.0, %v648
  %650 = vmatmul.f32.gmra.mxu0 %v505
  %v651 = vpop.f32.mrf.mxu0
  %v652 = vadd.f32 0.0, %v651
  %653 = vmatmul.f32.gmra.mxu0 %v506
  %v654 = vpop.f32.mrf.mxu0
  %v655 = vadd.f32 0.0, %v654
  %656 = vmatmul.f32.gmra.mxu0 %v507
  %v657 = vpop.f32.mrf.mxu0
  %v658 = vadd.f32 0.0, %v657
  %659 = vmatmul.f32.gmra.mxu0 %v508
  %v660 = vpop.f32.mrf.mxu0
  %v661 = vadd.f32 0.0, %v660
  %662 = vmatmul.f32.gmra.mxu0 %v509
  %v663 = vpop.f32.mrf.mxu0
  %v664 = vadd.f32 0.0, %v663
  %665 = vmatmul.f32.gmra.mxu0 %v510
  %v666 = vpop.f32.mrf.mxu0
  %v667 = vadd.f32 0.0, %v666
  %668 = vmatmul.f32.gmra.mxu0 %v511
  %v669 = vpop.f32.mrf.mxu0
  %v670 = vadd.f32 0.0, %v669
  %671 = vmatmul.f32.gmra.mxu0 %v512
  %v672 = vpop.f32.mrf.mxu0
  %v673 = vadd.f32 0.0, %v672
  %674 = vmatmul.f32.gmra.mxu0 %v513
  %v675 = vpop.f32.mrf.mxu0
  %v676 = vadd.f32 0.0, %v675
  %677 = vdwg.mxu0
  %v678 = vld [vmem:[%s3] sm:$0xff]
  %v679 = vld [vmem:[%s3 + $0x8] sm:$0xff]
  %v680 = vld [vmem:[%s3 + $0x10] sm:$0xff]
  %v681 = vld [vmem:[%s3 + $0x18] sm:$0xff]
  %v682 = vld [vmem:[%s3 + $0x20] sm:$0xff]
  %v683 = vld [vmem:[%s3 + $0x28] sm:$0xff]
  %v684 = vld [vmem:[%s3 + $0x30] sm:$0xff]
  %v685 = vld [vmem:[%s3 + $0x38] sm:$0xff]
  %v686 = vld [vmem:[%s3 + $0x40] sm:$0xff]
  %v687 = vld [vmem:[%s3 + $0x48] sm:$0xff]
  %v688 = vld [vmem:[%s3 + $0x50] sm:$0xff]
  %v689 = vld [vmem:[%s3 + $0x58] sm:$0xff]
  %v690 = vld [vmem:[%s3 + $0x60] sm:$0xff]
  %v691 = vld [vmem:[%s3 + $0x68] sm:$0xff]
  %v692 = vld [vmem:[%s3 + $0x70] sm:$0xff]
  %v693 = vld [vmem:[%s3 + $0x78] sm:$0xff]
  %v694 = vld [vmem:[%s3 + $0x80] sm:$0xff]
  %v695 = vld [vmem:[%s3 + $0x88] sm:$0xff]
  %v696 = vld [vmem:[%s3 + $0x90] sm:$0xff]
  %v697 = vld [vmem:[%s3 + $0x98] sm:$0xff]
  %v698 = vld [vmem:[%s3 + $0xa0] sm:$0xff]
  %v699 = vld [vmem:[%s3 + $0xa8] sm:$0xff]
  %v700 = vld [vmem:[%s3 + $0xb0] sm:$0xff]
  %v701 = vld [vmem:[%s3 + $0xb8] sm:$0xff]
  %v702 = vld [vmem:[%s3 + $0xc0] sm:$0xff]
  %v703 = vld [vmem:[%s3 + $0xc8] sm:$0xff]
  %v704 = vld [vmem:[%s3 + $0xd0] sm:$0xff]
  %v705 = vld [vmem:[%s3 + $0xd8] sm:$0xff]
  %v706 = vld [vmem:[%s3 + $0xe0] sm:$0xff]
  %v707 = vld [vmem:[%s3 + $0xe8] sm:$0xff]
  %v708 = vld [vmem:[%s3 + $0xf0] sm:$0xff]
  %v709 = vld [vmem:[%s3 + $0xf8] sm:$0xff]
  %v710 = vld [vmem:[%s3 + $0x100] sm:$0xff]
  %v711 = vld [vmem:[%s3 + $0x108] sm:$0xff]
  %v712 = vld [vmem:[%s3 + $0x110] sm:$0xff]
  %v713 = vld [vmem:[%s3 + $0x118] sm:$0xff]
  %v714 = vld [vmem:[%s3 + $0x120] sm:$0xff]
  %v715 = vld [vmem:[%s3 + $0x128] sm:$0xff]
  %v716 = vld [vmem:[%s3 + $0x130] sm:$0xff]
  %v717 = vld [vmem:[%s3 + $0x138] sm:$0xff]
  %v718 = vld [vmem:[%s3 + $0x140] sm:$0xff]
  %v719 = vld [vmem:[%s3 + $0x148] sm:$0xff]
  %v720 = vld [vmem:[%s3 + $0x150] sm:$0xff]
  %v721 = vld [vmem:[%s3 + $0x158] sm:$0xff]
  %v722 = vld [vmem:[%s3 + $0x160] sm:$0xff]
  %v723 = vld [vmem:[%s3 + $0x168] sm:$0xff]
  %v724 = vld [vmem:[%s3 + $0x170] sm:$0xff]
  %v725 = vld [vmem:[%s3 + $0x178] sm:$0xff]
  %v726 = vld [vmem:[%s3 + $0x180] sm:$0xff]
  %727 = vmatpush.msra.mxu0 %v38
  %728 = vmatpush.msra.mxu0 %v37
  %729 = vmatpush.msra.mxu0 %v36
  %730 = vmatpush.msra.mxu0 %v35
  %731 = vmatpush.msra.mxu0 %v34
  %732 = vmatpush.msra.mxu0 %v33
  %733 = vmatpush.msra.mxu0 %v32
  %734 = vmatpush.msra.mxu0 %v31
  %735 = vmatpush.msra.mxu0 %v30
  %736 = vmatpush.msra.mxu0 %v29
  %737 = vmatpush.msra.mxu0 %v28
  %738 = vmatpush.msra.mxu0 %v27
  %739 = vmatpush.msra.mxu0 %v26
  %740 = vmatpush.msra.mxu0 %v25
  %741 = vmatpush.msra.mxu0 %v24
  %742 = vmatpush.msra.mxu0 %v23
  %743 = vmatmul.f32.gmra.mxu0 %v678
  %v744 = vpop.f32.mrf.mxu0
  %v745 = vadd.f32 0.0, %v744
  %746 = vmatmul.f32.gmra.mxu0 %v679
  %v747 = vpop.f32.mrf.mxu0
  %v748 = vadd.f32 0.0, %v747
  %749 = vmatmul.f32.gmra.mxu0 %v680
  %v750 = vpop.f32.mrf.mxu0
  %v751 = vadd.f32 0.0, %v750
  %752 = vmatmul.f32.gmra.mxu0 %v681
  %v753 = vpop.f32.mrf.mxu0
  %v754 = vadd.f32 0.0, %v753
  %755 = vmatmul.f32.gmra.mxu0 %v682
  %v756 = vpop.f32.mrf.mxu0
  %v757 = vadd.f32 0.0, %v756
  %758 = vmatmul.f32.gmra.mxu0 %v683
  %v759 = vpop.f32.mrf.mxu0
  %v760 = vadd.f32 0.0, %v759
  %761 = vmatmul.f32.gmra.mxu0 %v684
  %v762 = vpop.f32.mrf.mxu0
  %v763 = vadd.f32 0.0, %v762
  %764 = vmatmul.f32.gmra.mxu0 %v685
  %v765 = vpop.f32.mrf.mxu0
  %v766 = vadd.f32 0.0, %v765
  %767 = vmatmul.f32.gmra.mxu0 %v686
  %v768 = vpop.f32.mrf.mxu0
  %v769 = vadd.f32 0.0, %v768
  %770 = vmatmul.f32.gmra.mxu0 %v687
  %v771 = vpop.f32.mrf.mxu0
  %v772 = vadd.f32 0.0, %v771
  %773 = vmatmul.f32.gmra.mxu0 %v688
  %v774 = vpop.f32.mrf.mxu0
  %v775 = vadd.f32 0.0, %v774
  %776 = vmatmul.f32.gmra.mxu0 %v689
  %v777 = vpop.f32.mrf.mxu0
  %v778 = vadd.f32 0.0, %v777
  %779 = vmatmul.f32.gmra.mxu0 %v690
  %v780 = vpop.f32.mrf.mxu0
  %v781 = vadd.f32 0.0, %v780
  %782 = vmatmul.f32.gmra.mxu0 %v691
  %v783 = vpop.f32.mrf.mxu0
  %v784 = vadd.f32 0.0, %v783
  %785 = vmatmul.f32.gmra.mxu0 %v692
  %v786 = vpop.f32.mrf.mxu0
  %v787 = vadd.f32 0.0, %v786
  %788 = vmatmul.f32.gmra.mxu0 %v693
  %v789 = vpop.f32.mrf.mxu0
  %v790 = vadd.f32 0.0, %v789
  %791 = vmatmul.f32.gmra.mxu0 %v694
  %v792 = vpop.f32.mrf.mxu0
  %v793 = vadd.f32 0.0, %v792
  %794 = vmatmul.f32.gmra.mxu0 %v695
  %v795 = vpop.f32.mrf.mxu0
  %v796 = vadd.f32 0.0, %v795
  %797 = vmatmul.f32.gmra.mxu0 %v696
  %v798 = vpop.f32.mrf.mxu0
  %v799 = vadd.f32 0.0, %v798
  %800 = vmatmul.f32.gmra.mxu0 %v697
  %v801 = vpop.f32.mrf.mxu0
  %v802 = vadd.f32 0.0, %v801
  %803 = vmatmul.f32.gmra.mxu0 %v698
  %v804 = vpop.f32.mrf.mxu0
  %v805 = vadd.f32 0.0, %v804
  %806 = vmatmul.f32.gmra.mxu0 %v699
  %v807 = vpop.f32.mrf.mxu0
  %v808 = vadd.f32 0.0, %v807
  %809 = vmatmul.f32.gmra.mxu0 %v700
  %v810 = vpop.f32.mrf.mxu0
  %v811 = vadd.f32 0.0, %v810
  %812 = vmatmul.f32.gmra.mxu0 %v701
  %v813 = vpop.f32.mrf.mxu0
  %v814 = vadd.f32 0.0, %v813
  %815 = vmatmul.f32.gmra.mxu0 %v702
  %v816 = vpop.f32.mrf.mxu0
  %v817 = vadd.f32 0.0, %v816
  %818 = vmatmul.f32.gmra.mxu0 %v703
  %v819 = vpop.f32.mrf.mxu0
  %v820 = vadd.f32 0.0, %v819
  %821 = vmatmul.f32.gmra.mxu0 %v704
  %v822 = vpop.f32.mrf.mxu0
  %v823 = vadd.f32 0.0, %v822
  %824 = vmatmul.f32.gmra.mxu0 %v705
  %v825 = vpop.f32.mrf.mxu0
  %v826 = vadd.f32 0.0, %v825
  %827 = vmatmul.f32.gmra.mxu0 %v706
  %v828 = vpop.f32.mrf.mxu0
  %v829 = vadd.f32 0.0, %v828
  %830 = vmatmul.f32.gmra.mxu0 %v707
  %v831 = vpop.f32.mrf.mxu0
  %v832 = vadd.f32 0.0, %v831
  %833 = vmatmul.f32.gmra.mxu0 %v708
  %v834 = vpop.f32.mrf.mxu0
  %v835 = vadd.f32 0.0, %v834
  %836 = vmatmul.f32.gmra.mxu0 %v709
  %v837 = vpop.f32.mrf.mxu0
  %v838 = vadd.f32 0.0, %v837
  %839 = vmatmul.f32.gmra.mxu0 %v710
  %v840 = vpop.f32.mrf.mxu0
  %v841 = vadd.f32 0.0, %v840
  %842 = vmatmul.f32.gmra.mxu0 %v711
  %v843 = vpop.f32.mrf.mxu0
  %v844 = vadd.f32 0.0, %v843
  %845 = vmatmul.f32.gmra.mxu0 %v712
  %v846 = vpop.f32.mrf.mxu0
  %v847 = vadd.f32 0.0, %v846
  %848 = vmatmul.f32.gmra.mxu0 %v713
  %v849 = vpop.f32.mrf.mxu0
  %v850 = vadd.f32 0.0, %v849
  %851 = vmatmul.f32.gmra.mxu0 %v714
  %v852 = vpop.f32.mrf.mxu0
  %v853 = vadd.f32 0.0, %v852
  %854 = vmatmul.f32.gmra.mxu0 %v715
  %v855 = vpop.f32.mrf.mxu0
  %v856 = vadd.f32 0.0, %v855
  %857 = vmatmul.f32.gmra.mxu0 %v716
  %v858 = vpop.f32.mrf.mxu0
  %v859 = vadd.f32 0.0, %v858
  %860 = vmatmul.f32.gmra.mxu0 %v717
  %v861 = vpop.f32.mrf.mxu0
  %v862 = vadd.f32 0.0, %v861
  %863 = vmatmul.f32.gmra.mxu0 %v718
  %v864 = vpop.f32.mrf.mxu0
  %v865 = vadd.f32 0.0, %v864
  %866 = vmatmul.f32.gmra.mxu0 %v719
  %v867 = vpop.f32.mrf.mxu0
  %v868 = vadd.f32 0.0, %v867
  %869 = vmatmul.f32.gmra.mxu0 %v720
  %v870 = vpop.f32.mrf.mxu0
  %v871 = vadd.f32 0.0, %v870
  %872 = vmatmul.f32.gmra.mxu0 %v721
  %v873 = vpop.f32.mrf.mxu0
  %v874 = vadd.f32 0.0, %v873
  %875 = vmatmul.f32.gmra.mxu0 %v722
  %v876 = vpop.f32.mrf.mxu0
  %v877 = vadd.f32 0.0, %v876
  %878 = vmatmul.f32.gmra.mxu0 %v723
  %v879 = vpop.f32.mrf.mxu0
  %v880 = vadd.f32 0.0, %v879
  %881 = vmatmul.f32.gmra.mxu0 %v724
  %v882 = vpop.f32.mrf.mxu0
  %v883 = vadd.f32 0.0, %v882
  %884 = vmatmul.f32.gmra.mxu0 %v725
  %v885 = vpop.f32.mrf.mxu0
  %v886 = vadd.f32 0.0, %v885
  %887 = vmatmul.f32.gmra.mxu0 %v726
  %v888 = vpop.f32.mrf.mxu0
  %v889 = vadd.f32 0.0, %v888
  %890 = vdwg.mxu0
  %v891 = vmax.f32 %v106, %v319
  %v892 = vmax.f32 %v109, %v322
  %v893 = vmax.f32 %v112, %v325
  %v894 = vmax.f32 %v115, %v328
  %v895 = vmax.f32 %v118, %v331
  %v896 = vmax.f32 %v121, %v334
  %v897 = vmax.f32 %v124, %v337
  %v898 = vmax.f32 %v127, %v340
  %v899 = vmax.f32 %v130, %v343
  %v900 = vmax.f32 %v133, %v346
  %v901 = vmax.f32 %v136, %v349
  %v902 = vmax.f32 %v139, %v352
  %v903 = vmax.f32 %v142, %v355
  %v904 = vmax.f32 %v145, %v358
  %v905 = vmax.f32 %v148, %v361
  %v906 = vmax.f32 %v151, %v364
  %v907 = vmax.f32 %v154, %v367
  %v908 = vmax.f32 %v157, %v370
  %v909 = vmax.f32 %v160, %v373
  %v910 = vmax.f32 %v163, %v376
  %v911 = vmax.f32 %v166, %v379
  %v912 = vmax.f32 %v169, %v382
  %v913 = vmax.f32 %v172, %v385
  %v914 = vmax.f32 %v175, %v388
  %v915 = vmax.f32 %v178, %v391
  %v916 = vmax.f32 %v181, %v394
  %v917 = vmax.f32 %v184, %v397
  %v918 = vmax.f32 %v187, %v400
  %v919 = vmax.f32 %v190, %v403
  %v920 = vmax.f32 %v193, %v406
  %v921 = vmax.f32 %v196, %v409
  %v922 = vmax.f32 %v199, %v412
  %v923 = vmax.f32 %v202, %v415
  %v924 = vmax.f32 %v205, %v418
  %v925 = vmax.f32 %v208, %v421
  %v926 = vmax.f32 %v211, %v424
  %v927 = vmax.f32 %v214, %v427
  %v928 = vmax.f32 %v217, %v430
  %v929 = vmax.f32 %v220, %v433
  %v930 = vmax.f32 %v223, %v436
  %v931 = vmax.f32 %v226, %v439
  %v932 = vmax.f32 %v229, %v442
  %v933 = vmax.f32 %v232, %v445
  %v934 = vmax.f32 %v235, %v448
  %v935 = vmax.f32 %v238, %v451
  %v936 = vmax.f32 %v241, %v454
  %v937 = vmax.f32 %v244, %v457
  %v938 = vmax.f32 %v247, %v460
  %v939 = vmax.f32 %v250, %v463
  %v940 = vmax.f32 %v532, %v745
  %v941 = vmax.f32 %v535, %v748
  %v942 = vmax.f32 %v538, %v751
  %v943 = vmax.f32 %v541, %v754
  %v944 = vmax.f32 %v544, %v757
  %v945 = vmax.f32 %v547, %v760
  %v946 = vmax.f32 %v550, %v763
  %v947 = vmax.f32 %v553, %v766
  %v948 = vmax.f32 %v556, %v769
  %v949 = vmax.f32 %v559, %v772
  %v950 = vmax.f32 %v562, %v775
  %v951 = vmax.f32 %v565, %v778
  %v952 = vmax.f32 %v568, %v781
  %v953 = vmax.f32 %v571, %v784
  %v954 = vmax.f32 %v574, %v787
  %v955 = vmax.f32 %v577, %v790
  %v956 = vmax.f32 %v580, %v793
  %v957 = vmax.f32 %v583, %v796
  %v958 = vmax.f32 %v586, %v799
  %v959 = vmax.f32 %v589, %v802
  %v960 = vmax.f32 %v592, %v805
  %v961 = vmax.f32 %v595, %v808
  %v962 = vmax.f32 %v598, %v811
  %v963 = vmax.f32 %v601, %v814
  %v964 = vmax.f32 %v604, %v817
  %v965 = vmax.f32 %v607, %v820
  %v966 = vmax.f32 %v610, %v823
  %v967 = vmax.f32 %v613, %v826
  %v968 = vmax.f32 %v616, %v829
  %v969 = vmax.f32 %v619, %v832
  %v970 = vmax.f32 %v622, %v835
  %v971 = vmax.f32 %v625, %v838
  %v972 = vmax.f32 %v628, %v841
  %v973 = vmax.f32 %v631, %v844
  %v974 = vmax.f32 %v634, %v847
  %v975 = vmax.f32 %v637, %v850
  %v976 = vmax.f32 %v640, %v853
  %v977 = vmax.f32 %v643, %v856
  %v978 = vmax.f32 %v646, %v859
  %v979 = vmax.f32 %v649, %v862
  %v980 = vmax.f32 %v652, %v865
  %v981 = vmax.f32 %v655, %v868
  %v982 = vmax.f32 %v658, %v871
  %v983 = vmax.f32 %v661, %v874
  %v984 = vmax.f32 %v664, %v877
  %v985 = vmax.f32 %v667, %v880
  %v986 = vmax.f32 %v670, %v883
  %v987 = vmax.f32 %v673, %v886
  %v988 = vmax.f32 %v676, %v889
  %v989 = vmax.f32 %v891, %v940
  %v990 = vmax.f32 %v892, %v941
  %v991 = vmax.f32 %v893, %v942
  %v992 = vmax.f32 %v894, %v943
  %v993 = vmax.f32 %v895, %v944
  %v994 = vmax.f32 %v896, %v945
  %v995 = vmax.f32 %v897, %v946
  %v996 = vmax.f32 %v898, %v947
  %v997 = vmax.f32 %v899, %v948
  %v998 = vmax.f32 %v900, %v949
  %v999 = vmax.f32 %v901, %v950
  %v1000 = vmax.f32 %v902, %v951
  %v1001 = vmax.f32 %v903, %v952
  %v1002 = vmax.f32 %v904, %v953
  %v1003 = vmax.f32 %v905, %v954
  %v1004 = vmax.f32 %v906, %v955
  %v1005 = vmax.f32 %v907, %v956
  %v1006 = vmax.f32 %v908, %v957
  %v1007 = vmax.f32 %v909, %v958
  %v1008 = vmax.f32 %v910, %v959
  %v1009 = vmax.f32 %v911, %v960
  %v1010 = vmax.f32 %v912, %v961
  %v1011 = vmax.f32 %v913, %v962
  %v1012 = vmax.f32 %v914, %v963
  %v1013 = vmax.f32 %v915, %v964
  %v1014 = vmax.f32 %v916, %v965
  %v1015 = vmax.f32 %v917, %v966
  %v1016 = vmax.f32 %v918, %v967
  %v1017 = vmax.f32 %v919, %v968
  %v1018 = vmax.f32 %v920, %v969
  %v1019 = vmax.f32 %v921, %v970
  %v1020 = vmax.f32 %v922, %v971
  %v1021 = vmax.f32 %v923, %v972
  %v1022 = vmax.f32 %v924, %v973
  %v1023 = vmax.f32 %v925, %v974
  %v1024 = vmax.f32 %v926, %v975
  %v1025 = vmax.f32 %v927, %v976
  %v1026 = vmax.f32 %v928, %v977
  %v1027 = vmax.f32 %v929, %v978
  %v1028 = vmax.f32 %v930, %v979
  %v1029 = vmax.f32 %v931, %v980
  %v1030 = vmax.f32 %v932, %v981
  %v1031 = vmax.f32 %v933, %v982
  %v1032 = vmax.f32 %v934, %v983
  %v1033 = vmax.f32 %v935, %v984
  %v1034 = vmax.f32 %v936, %v985
  %v1035 = vmax.f32 %v937, %v986
  %v1036 = vmax.f32 %v938, %v987
  %v1037 = vmax.f32 %v939, %v988
  %v1038 = vld [vmem:[%s5] sm:$0x1]
  %v1040 = vperm.slane %v1038, 0
  %v1042 = vadd.f32 %v989, %v1040
  %v1043 = vadd.f32 %v990, %v1040
  %v1044 = vadd.f32 %v991, %v1040
  %v1045 = vadd.f32 %v992, %v1040
  %v1046 = vadd.f32 %v993, %v1040
  %v1047 = vadd.f32 %v994, %v1040
  %v1048 = vadd.f32 %v995, %v1040
  %v1049 = vadd.f32 %v996, %v1040
  %v1050 = vadd.f32 %v997, %v1040
  %v1051 = vadd.f32 %v998, %v1040
  %v1052 = vadd.f32 %v999, %v1040
  %v1053 = vadd.f32 %v1000, %v1040
  %v1054 = vadd.f32 %v1001, %v1040
  %v1055 = vadd.f32 %v1002, %v1040
  %v1056 = vadd.f32 %v1003, %v1040
  %v1057 = vadd.f32 %v1004, %v1040
  %v1058 = vadd.f32 %v1005, %v1040
  %v1059 = vadd.f32 %v1006, %v1040
  %v1060 = vadd.f32 %v1007, %v1040
  %v1061 = vadd.f32 %v1008, %v1040
  %v1062 = vadd.f32 %v1009, %v1040
  %v1063 = vadd.f32 %v1010, %v1040
  %v1064 = vadd.f32 %v1011, %v1040
  %v1065 = vadd.f32 %v1012, %v1040
  %v1066 = vadd.f32 %v1013, %v1040
  %v1067 = vadd.f32 %v1014, %v1040
  %v1068 = vadd.f32 %v1015, %v1040
  %v1069 = vadd.f32 %v1016, %v1040
  %v1070 = vadd.f32 %v1017, %v1040
  %v1071 = vadd.f32 %v1018, %v1040
  %v1072 = vadd.f32 %v1019, %v1040
  %v1073 = vadd.f32 %v1020, %v1040
  %v1074 = vadd.f32 %v1021, %v1040
  %v1075 = vadd.f32 %v1022, %v1040
  %v1076 = vadd.f32 %v1023, %v1040
  %v1077 = vadd.f32 %v1024, %v1040
  %v1078 = vadd.f32 %v1025, %v1040
  %v1079 = vadd.f32 %v1026, %v1040
  %v1080 = vadd.f32 %v1027, %v1040
  %v1081 = vadd.f32 %v1028, %v1040
  %v1082 = vadd.f32 %v1029, %v1040
  %v1083 = vadd.f32 %v1030, %v1040
  %v1084 = vadd.f32 %v1031, %v1040
  %v1085 = vadd.f32 %v1032, %v1040
  %v1086 = vadd.f32 %v1033, %v1040
  %v1087 = vadd.f32 %v1034, %v1040
  %v1088 = vadd.f32 %v1035, %v1040
  %v1089 = vadd.f32 %v1036, %v1040
  %v1090 = vadd.f32 %v1037, %v1040
  %v1091 = vmax.f32 %v1042, 0.0
  %v1092 = vmax.f32 %v1043, 0.0
  %v1093 = vmax.f32 %v1044, 0.0
  %v1094 = vmax.f32 %v1045, 0.0
  %v1095 = vmax.f32 %v1046, 0.0
  %v1096 = vmax.f32 %v1047, 0.0
  %v1097 = vmax.f32 %v1048, 0.0
  %v1098 = vmax.f32 %v1049, 0.0
  %v1099 = vmax.f32 %v1050, 0.0
  %v1100 = vmax.f32 %v1051, 0.0
  %v1101 = vmax.f32 %v1052, 0.0
  %v1102 = vmax.f32 %v1053, 0.0
  %v1103 = vmax.f32 %v1054, 0.0
  %v1104 = vmax.f32 %v1055, 0.0
  %v1105 = vmax.f32 %v1056, 0.0
  %v1106 = vmax.f32 %v1057, 0.0
  %v1107 = vmax.f32 %v1058, 0.0
  %v1108 = vmax.f32 %v1059, 0.0
  %v1109 = vmax.f32 %v1060, 0.0
  %v1110 = vmax.f32 %v1061, 0.0
  %v1111 = vmax.f32 %v1062, 0.0
  %v1112 = vmax.f32 %v1063, 0.0
  %v1113 = vmax.f32 %v1064, 0.0
  %v1114 = vmax.f32 %v1065, 0.0
  %v1115 = vmax.f32 %v1066, 0.0
  %v1116 = vmax.f32 %v1067, 0.0
  %v1117 = vmax.f32 %v1068, 0.0
  %v1118 = vmax.f32 %v1069, 0.0
  %v1119 = vmax.f32 %v1070, 0.0
  %v1120 = vmax.f32 %v1071, 0.0
  %v1121 = vmax.f32 %v1072, 0.0
  %v1122 = vmax.f32 %v1073, 0.0
  %v1123 = vmax.f32 %v1074, 0.0
  %v1124 = vmax.f32 %v1075, 0.0
  %v1125 = vmax.f32 %v1076, 0.0
  %v1126 = vmax.f32 %v1077, 0.0
  %v1127 = vmax.f32 %v1078, 0.0
  %v1128 = vmax.f32 %v1079, 0.0
  %v1129 = vmax.f32 %v1080, 0.0
  %v1130 = vmax.f32 %v1081, 0.0
  %v1131 = vmax.f32 %v1082, 0.0
  %v1132 = vmax.f32 %v1083, 0.0
  %v1133 = vmax.f32 %v1084, 0.0
  %v1134 = vmax.f32 %v1085, 0.0
  %v1135 = vmax.f32 %v1086, 0.0
  %v1136 = vmax.f32 %v1087, 0.0
  %v1137 = vmax.f32 %v1088, 0.0
  %v1138 = vmax.f32 %v1089, 0.0
  %v1139 = vmax.f32 %v1090, 0.0
  %1140 = vst [vmem:[%s6] sm:$0xff] %v1091
  %1141 = vst [vmem:[%s6 + $0x8] sm:$0xff] %v1092
  %1142 = vst [vmem:[%s6 + $0x10] sm:$0xff] %v1093
  %1143 = vst [vmem:[%s6 + $0x18] sm:$0xff] %v1094
  %1144 = vst [vmem:[%s6 + $0x20] sm:$0xff] %v1095
  %1145 = vst [vmem:[%s6 + $0x28] sm:$0xff] %v1096
  %1146 = vst [vmem:[%s6 + $0x30] sm:$0xff] %v1097
  %1147 = vst [vmem:[%s6 + $0x38] sm:$0xff] %v1098
  %1148 = vst [vmem:[%s6 + $0x40] sm:$0xff] %v1099
  %1149 = vst [vmem:[%s6 + $0x48] sm:$0xff] %v1100
  %1150 = vst [vmem:[%s6 + $0x50] sm:$0xff] %v1101
  %1151 = vst [vmem:[%s6 + $0x58] sm:$0xff] %v1102
  %1152 = vst [vmem:[%s6 + $0x60] sm:$0xff] %v1103
  %1153 = vst [vmem:[%s6 + $0x68] sm:$0xff] %v1104
  %1154 = vst [vmem:[%s6 + $0x70] sm:$0xff] %v1105
  %1155 = vst [vmem:[%s6 + $0x78] sm:$0xff] %v1106
  %1156 = vst [vmem:[%s6 + $0x80] sm:$0xff] %v1107
  %1157 = vst [vmem:[%s6 + $0x88] sm:$0xff] %v1108
  %1158 = vst [vmem:[%s6 + $0x90] sm:$0xff] %v1109
  %1159 = vst [vmem:[%s6 + $0x98] sm:$0xff] %v1110
  %1160 = vst [vmem:[%s6 + $0xa0] sm:$0xff] %v1111
  %1161 = vst [vmem:[%s6 + $0xa8] sm:$0xff] %v1112
  %1162 = vst [vmem:[%s6 + $0xb0] sm:$0xff] %v1113
  %1163 = vst [vmem:[%s6 + $0xb8] sm:$0xff] %v1114
  %1164 = vst [vmem:[%s6 + $0xc0] sm:$0xff] %v1115
  %1165 = vst [vmem:[%s6 + $0xc8] sm:$0xff] %v1116
  %1166 = vst [vmem:[%s6 + $0xd0] sm:$0xff] %v1117
  %1167 = vst [vmem:[%s6 + $0xd8] sm:$0xff] %v1118
  %1168 = vst [vmem:[%s6 + $0xe0] sm:$0xff] %v1119
  %1169 = vst [vmem:[%s6 + $0xe8] sm:$0xff] %v1120
  %1170 = vst [vmem:[%s6 + $0xf0] sm:$0xff] %v1121
  %1171 = vst [vmem:[%s6 + $0xf8] sm:$0xff] %v1122
  %1172 = vst [vmem:[%s6 + $0x100] sm:$0xff] %v1123
  %1173 = vst [vmem:[%s6 + $0x108] sm:$0xff] %v1124
  %1174 = vst [vmem:[%s6 + $0x110] sm:$0xff] %v1125
  %1175 = vst [vmem:[%s6 + $0x118] sm:$0xff] %v1126
  %1176 = vst [vmem:[%s6 + $0x120] sm:$0xff] %v1127
  %1177 = vst [vmem:[%s6 + $0x128] sm:$0xff] %v1128
  %1178 = vst [vmem:[%s6 + $0x130] sm:$0xff] %v1129
  %1179 = vst [vmem:[%s6 + $0x138] sm:$0xff] %v1130
  %1180 = vst [vmem:[%s6 + $0x140] sm:$0xff] %v1131
  %1181 = vst [vmem:[%s6 + $0x148] sm:$0xff] %v1132
  %1182 = vst [vmem:[%s6 + $0x150] sm:$0xff] %v1133
  %1183 = vst [vmem:[%s6 + $0x158] sm:$0xff] %v1134
  %1184 = vst [vmem:[%s6 + $0x160] sm:$0xff] %v1135
  %1185 = vst [vmem:[%s6 + $0x168] sm:$0xff] %v1136
  %1186 = vst [vmem:[%s6 + $0x170] sm:$0xff] %v1137
  %1187 = vst [vmem:[%s6 + $0x178] sm:$0xff] %v1138
  %1188 = vst [vmem:[%s6 + $0x180] sm:$0xff] %v1139
  // Predicated region
  $region26: #{net_forward.3} parent=0 // pred_check
    _
  $region27: #{net_forward.3} parent=0 // pred_check_branch
    %1190 = sbr.rel (0) target = $region29
  $region28: #{net_forward.3} parent=0 // pred_region
    _
  $region29: #{net_forward.3} parent=0 // pred_fallthru
    _
  // Predicated region
  $region30: #{net_forward.3} parent=0 // pred_check
    _
  $region31: #{net_forward.3} parent=0 // pred_check_branch
    %1192 = sbr.rel (0) target = $region33
  $region32: #{net_forward.3} parent=0 // pred_region
    _
  $region33: #{net_forward.3} parent=0 // pred_fallthru
    _

// kernel: net_forward.4
$region0: #{net_forward.4}
  #allocation0 [shape = 'u32[]', space=smem, size = 0x4, offset = 0x4, fixed_abs, tag = 'smem constant byte address 0x4 - core index']
  #allocation1 [shape = 'u32[72,128]{1,0:T(1,128)}', space=vmem, size = 0x9000, scoped, tag = 'internal scratch']
  %s0 = inlined_call_operand.vmem [shape: f32[56,256], index: 0, kind: input, shape index: {}]
  %s1 = inlined_call_operand.vmem [shape: f32[56,256], index: 1, kind: input, shape index: {}]
  %s2 = inlined_call_operand.vmem [shape: f32[56,256], index: 2, kind: input, shape index: {}]
  %s3 = inlined_call_operand.vmem [shape: f32[56,256], index: 3, kind: input, shape index: {}]
  %s4 = inlined_call_operand.vmem [shape: f32[256,128], index: 4, kind: input, shape index: {}]
  %s5 = inlined_call_operand.vmem [shape: f32[1,128], index: 5, kind: input, shape index: {}]
  %s6 = inlined_call_operand.vmem [shape: f32[56,128], index: 6, kind: output, shape index: {}]
  %s7 = sld [smem:[#allocation0]]
  $region34: #{net_forward.4} parent=0
    _
  %s9 = ssub.s32 1, %s7
  %s10 = scalar_select 0, %s9, %s7
  // Predicated region
  $region2: #{net_forward.4} parent=0 // pred_check
    _
  $region3: #{net_forward.4} parent=0 // pred_check_branch
    %12 = sbr.rel (0) target = $region5
  $region4: #{net_forward.4} parent=0 // pred_region
    _
  $region5: #{net_forward.4} parent=0 // pred_fallthru
    _
  // Predicated region
  $region6: #{net_forward.4} parent=0 // pred_check
    _
  $region7: #{net_forward.4} parent=0 // pred_check_branch
    %14 = sbr.rel (0) target = $region9
  $region8: #{net_forward.4} parent=0 // pred_region
    _
  $region9: #{net_forward.4} parent=0 // pred_fallthru
    _
  // Predicated region
  $region10: #{net_forward.4} parent=0 // pred_check
    _
  $region11: #{net_forward.4} parent=0 // pred_check_branch
    %16 = sbr.rel (0) target = $region13
  $region12: #{net_forward.4} parent=0 // pred_region
    _
  $region13: #{net_forward.4} parent=0 // pred_fallthru
    _
  // Predicated region
  $region14: #{net_forward.4} parent=0 // pred_check
    _
  $region15: #{net_forward.4} parent=0 // pred_check_branch
    %18 = sbr.rel (0) target = $region17
  $region16: #{net_forward.4} parent=0 // pred_region
    _
  $region17: #{net_forward.4} parent=0 // pred_fallthru
    _
  // Predicated region
  $region18: #{net_forward.4} parent=0 // pred_check
    _
  $region19: #{net_forward.4} parent=0 // pred_check_branch
    %20 = sbr.rel (0) target = $region21
  $region20: #{net_forward.4} parent=0 // pred_region
    _
  $region21: #{net_forward.4} parent=0 // pred_fallthru
    _
  // Predicated region
  $region22: #{net_forward.4} parent=0 // pred_check
    _
  $region23: #{net_forward.4} parent=0 // pred_check_branch
    %22 = sbr.rel (0) target = $region25
  $region24: #{net_forward.4} parent=0 // pred_region
    _
  $region25: #{net_forward.4} parent=0 // pred_fallthru
    _
  %v23 = vld [vmem:[%s4] sm:$0xff]
  %v24 = vld [vmem:[%s4 + $0x8] sm:$0xff]
  %v25 = vld [vmem:[%s4 + $0x10] sm:$0xff]
  %v26 = vld [vmem:[%s4 + $0x18] sm:$0xff]
  %v27 = vld [vmem:[%s4 + $0x20] sm:$0xff]
  %v28 = vld [vmem:[%s4 + $0x28] sm:$0xff]
  %v29 = vld [vmem:[%s4 + $0x30] sm:$0xff]
  %v30 = vld [vmem:[%s4 + $0x38] sm:$0xff]
  %v31 = vld [vmem:[%s4 + $0x40] sm:$0xff]
  %v32 = vld [vmem:[%s4 + $0x48] sm:$0xff]
  %v33 = vld [vmem:[%s4 + $0x50] sm:$0xff]
  %v34 = vld [vmem:[%s4 + $0x58] sm:$0xff]
  %v35 = vld [vmem:[%s4 + $0x60] sm:$0xff]
  %v36 = vld [vmem:[%s4 + $0x68] sm:$0xff]
  %v37 = vld [vmem:[%s4 + $0x70] sm:$0xff]
  %v38 = vld [vmem:[%s4 + $0x78] sm:$0xff]
  %v39 = vld [vmem:[%s4 + $0x80] sm:$0xff]
  %v40 = vld [vmem:[%s4 + $0x88] sm:$0xff]
  %v41 = vld [vmem:[%s4 + $0x90] sm:$0xff]
  %v42 = vld [vmem:[%s4 + $0x98] sm:$0xff]
  %v43 = vld [vmem:[%s4 + $0xa0] sm:$0xff]
  %v44 = vld [vmem:[%s4 + $0xa8] sm:$0xff]
  %v45 = vld [vmem:[%s4 + $0xb0] sm:$0xff]
  %v46 = vld [vmem:[%s4 + $0xb8] sm:$0xff]
  %v47 = vld [vmem:[%s4 + $0xc0] sm:$0xff]
  %v48 = vld [vmem:[%s4 + $0xc8] sm:$0xff]
  %v49 = vld [vmem:[%s4 + $0xd0] sm:$0xff]
  %v50 = vld [vmem:[%s4 + $0xd8] sm:$0xff]
  %v51 = vld [vmem:[%s4 + $0xe0] sm:$0xff]
  %v52 = vld [vmem:[%s4 + $0xe8] sm:$0xff]
  %v53 = vld [vmem:[%s4 + $0xf0] sm:$0xff]
  %v54 = vld [vmem:[%s4 + $0xf8] sm:$0xff]
  %v55 = vld [vmem:[%s0] sm:$0xff]
  %v56 = vld [vmem:[%s0 + $0x8] sm:$0xff]
  %v57 = vld [vmem:[%s0 + $0x10] sm:$0xff]
  %v58 = vld [vmem:[%s0 + $0x18] sm:$0xff]
  %v59 = vld [vmem:[%s0 + $0x20] sm:$0xff]
  %v60 = vld [vmem:[%s0 + $0x28] sm:$0xff]
  %v61 = vld [vmem:[%s0 + $0x30] sm:$0xff]
  %v62 = vld [vmem:[%s0 + $0x38] sm:$0xff]
  %v63 = vld [vmem:[%s0 + $0x40] sm:$0xff]
  %v64 = vld [vmem:[%s0 + $0x48] sm:$0xff]
  %v65 = vld [vmem:[%s0 + $0x50] sm:$0xff]
  %v66 = vld [vmem:[%s0 + $0x58] sm:$0xff]
  %v67 = vld [vmem:[%s0 + $0x60] sm:$0xff]
  %v68 = vld [vmem:[%s0 + $0x68] sm:$0xff]
  %69 = vmatpush.msra.mxu0 %v38
  %70 = vmatpush.msra.mxu0 %v37
  %71 = vmatpush.msra.mxu0 %v36
  %72 = vmatpush.msra.mxu0 %v35
  %73 = vmatpush.msra.mxu0 %v34
  %74 = vmatpush.msra.mxu0 %v33
  %75 = vmatpush.msra.mxu0 %v32
  %76 = vmatpush.msra.mxu0 %v31
  %77 = vmatpush.msra.mxu0 %v30
  %78 = vmatpush.msra.mxu0 %v29
  %79 = vmatpush.msra.mxu0 %v28
  %80 = vmatpush.msra.mxu0 %v27
  %81 = vmatpush.msra.mxu0 %v26
  %82 = vmatpush.msra.mxu0 %v25
  %83 = vmatpush.msra.mxu0 %v24
  %84 = vmatpush.msra.mxu0 %v23
  %85 = vmatmul.f32.gmra.mxu0 %v55
  %v86 = vpop.f32.mrf.mxu0
  %v87 = vadd.f32 0.0, %v86
  %88 = vmatmul.f32.gmra.mxu0 %v57
  %v89 = vpop.f32.mrf.mxu0
  %v90 = vadd.f32 0.0, %v89
  %91 = vmatmul.f32.gmra.mxu0 %v59
  %v92 = vpop.f32.mrf.mxu0
  %v93 = vadd.f32 0.0, %v92
  %94 = vmatmul.f32.gmra.mxu0 %v61
  %v95 = vpop.f32.mrf.mxu0
  %v96 = vadd.f32 0.0, %v95
  %97 = vmatmul.f32.gmra.mxu0 %v63
  %v98 = vpop.f32.mrf.mxu0
  %v99 = vadd.f32 0.0, %v98
  %100 = vmatmul.f32.gmra.mxu0 %v65
  %v101 = vpop.f32.mrf.mxu0
  %v102 = vadd.f32 0.0, %v101
  %103 = vmatmul.f32.gmra.mxu0 %v67
  %v104 = vpop.f32.mrf.mxu0
  %v105 = vadd.f32 0.0, %v104
  %106 = vdwg.mxu0
  %107 = vmatpush.msra.mxu0 %v54
  %108 = vmatpush.msra.mxu0 %v53
  %109 = vmatpush.msra.mxu0 %v52
  %110 = vmatpush.msra.mxu0 %v51
  %111 = vmatpush.msra.mxu0 %v50
  %112 = vmatpush.msra.mxu0 %v49
  %113 = vmatpush.msra.mxu0 %v48
  %114 = vmatpush.msra.mxu0 %v47
  %115 = vmatpush.msra.mxu0 %v46
  %116 = vmatpush.msra.mxu0 %v45
  %117 = vmatpush.msra.mxu0 %v44
  %118 = vmatpush.msra.mxu0 %v43
  %119 = vmatpush.msra.mxu0 %v42
  %120 = vmatpush.msra.mxu0 %v41
  %121 = vmatpush.msra.mxu0 %v40
  %122 = vmatpush.msra.mxu0 %v39
  %123 = vmatmul.f32.gmra.mxu0 %v56
  %v124 = vpop.f32.mrf.mxu0
  %v125 = vadd.f32 %v87, %v124
  %126 = vmatmul.f32.gmra.mxu0 %v58
  %v127 = vpop.f32.mrf.mxu0
  %v128 = vadd.f32 %v90, %v127
  %129 = vmatmul.f32.gmra.mxu0 %v60
  %v130 = vpop.f32.mrf.mxu0
  %v131 = vadd.f32 %v93, %v130
  %132 = vmatmul.f32.gmra.mxu0 %v62
  %v133 = vpop.f32.mrf.mxu0
  %v134 = vadd.f32 %v96, %v133
  %135 = vmatmul.f32.gmra.mxu0 %v64
  %v136 = vpop.f32.mrf.mxu0
  %v137 = vadd.f32 %v99, %v136
  %138 = vmatmul.f32.gmra.mxu0 %v66
  %v139 = vpop.f32.mrf.mxu0
  %v140 = vadd.f32 %v102, %v139
  %141 = vmatmul.f32.gmra.mxu0 %v68
  %v142 = vpop.f32.mrf.mxu0
  %v143 = vadd.f32 %v105, %v142
  %144 = vdwg.mxu0
  %v145 = vld [vmem:[%s1] sm:$0xff]
  %v146 = vld [vmem:[%s1 + $0x8] sm:$0xff]
  %v147 = vld [vmem:[%s1 + $0x10] sm:$0xff]
  %v148 = vld [vmem:[%s1 + $0x18] sm:$0xff]
  %v149 = vld [vmem:[%s1 + $0x20] sm:$0xff]
  %v150 = vld [vmem:[%s1 + $0x28] sm:$0xff]
  %v151 = vld [vmem:[%s1 + $0x30] sm:$0xff]
  %v152 = vld [vmem:[%s1 + $0x38] sm:$0xff]
  %v153 = vld [vmem:[%s1 + $0x40] sm:$0xff]
  %v154 = vld [vmem:[%s1 + $0x48] sm:$0xff]
  %v155 = vld [vmem:[%s1 + $0x50] sm:$0xff]
  %v156 = vld [vmem:[%s1 + $0x58] sm:$0xff]
  %v157 = vld [vmem:[%s1 + $0x60] sm:$0xff]
  %v158 = vld [vmem:[%s1 + $0x68] sm:$0xff]
  %159 = vmatpush.msra.mxu0 %v38
  %160 = vmatpush.msra.mxu0 %v37
  %161 = vmatpush.msra.mxu0 %v36
  %162 = vmatpush.msra.mxu0 %v35
  %163 = vmatpush.msra.mxu0 %v34
  %164 = vmatpush.msra.mxu0 %v33
  %165 = vmatpush.msra.mxu0 %v32
  %166 = vmatpush.msra.mxu0 %v31
  %167 = vmatpush.msra.mxu0 %v30
  %168 = vmatpush.msra.mxu0 %v29
  %169 = vmatpush.msra.mxu0 %v28
  %170 = vmatpush.msra.mxu0 %v27
  %171 = vmatpush.msra.mxu0 %v26
  %172 = vmatpush.msra.mxu0 %v25
  %173 = vmatpush.msra.mxu0 %v24
  %174 = vmatpush.msra.mxu0 %v23
  %175 = vmatmul.f32.gmra.mxu0 %v145
  %v176 = vpop.f32.mrf.mxu0
  %v177 = vadd.f32 0.0, %v176
  %178 = vmatmul.f32.gmra.mxu0 %v147
  %v179 = vpop.f32.mrf.mxu0
  %v180 = vadd.f32 0.0, %v179
  %181 = vmatmul.f32.gmra.mxu0 %v149
  %v182 = vpop.f32.mrf.mxu0
  %v183 = vadd.f32 0.0, %v182
  %184 = vmatmul.f32.gmra.mxu0 %v151
  %v185 = vpop.f32.mrf.mxu0
  %v186 = vadd.f32 0.0, %v185
  %187 = vmatmul.f32.gmra.mxu0 %v153
  %v188 = vpop.f32.mrf.mxu0
  %v189 = vadd.f32 0.0, %v188
  %190 = vmatmul.f32.gmra.mxu0 %v155
  %v191 = vpop.f32.mrf.mxu0
  %v192 = vadd.f32 0.0, %v191
  %193 = vmatmul.f32.gmra.mxu0 %v157
  %v194 = vpop.f32.mrf.mxu0
  %v195 = vadd.f32 0.0, %v194
  %196 = vdwg.mxu0
  %197 = vmatpush.msra.mxu0 %v54
  %198 = vmatpush.msra.mxu0 %v53
  %199 = vmatpush.msra.mxu0 %v52
  %200 = vmatpush.msra.mxu0 %v51
  %201 = vmatpush.msra.mxu0 %v50
  %202 = vmatpush.msra.mxu0 %v49
  %203 = vmatpush.msra.mxu0 %v48
  %204 = vmatpush.msra.mxu0 %v47
  %205 = vmatpush.msra.mxu0 %v46
  %206 = vmatpush.msra.mxu0 %v45
  %207 = vmatpush.msra.mxu0 %v44
  %208 = vmatpush.msra.mxu0 %v43
  %209 = vmatpush.msra.mxu0 %v42
  %210 = vmatpush.msra.mxu0 %v41
  %211 = vmatpush.msra.mxu0 %v40
  %212 = vmatpush.msra.mxu0 %v39
  %213 = vmatmul.f32.gmra.mxu0 %v146
  %v214 = vpop.f32.mrf.mxu0
  %v215 = vadd.f32 %v177, %v214
  %216 = vmatmul.f32.gmra.mxu0 %v148
  %v217 = vpop.f32.mrf.mxu0
  %v218 = vadd.f32 %v180, %v217
  %219 = vmatmul.f32.gmra.mxu0 %v150
  %v220 = vpop.f32.mrf.mxu0
  %v221 = vadd.f32 %v183, %v220
  %222 = vmatmul.f32.gmra.mxu0 %v152
  %v223 = vpop.f32.mrf.mxu0
  %v224 = vadd.f32 %v186, %v223
  %225 = vmatmul.f32.gmra.mxu0 %v154
  %v226 = vpop.f32.mrf.mxu0
  %v227 = vadd.f32 %v189, %v226
  %228 = vmatmul.f32.gmra.mxu0 %v156
  %v229 = vpop.f32.mrf.mxu0
  %v230 = vadd.f32 %v192, %v229
  %231 = vmatmul.f32.gmra.mxu0 %v158
  %v232 = vpop.f32.mrf.mxu0
  %v233 = vadd.f32 %v195, %v232
  %234 = vdwg.mxu0
  %v235 = vld [vmem:[%s2] sm:$0xff]
  %v236 = vld [vmem:[%s2 + $0x8] sm:$0xff]
  %v237 = vld [vmem:[%s2 + $0x10] sm:$0xff]
  %v238 = vld [vmem:[%s2 + $0x18] sm:$0xff]
  %v239 = vld [vmem:[%s2 + $0x20] sm:$0xff]
  %v240 = vld [vmem:[%s2 + $0x28] sm:$0xff]
  %v241 = vld [vmem:[%s2 + $0x30] sm:$0xff]
  %v242 = vld [vmem:[%s2 + $0x38] sm:$0xff]
  %v243 = vld [vmem:[%s2 + $0x40] sm:$0xff]
  %v244 = vld [vmem:[%s2 + $0x48] sm:$0xff]
  %v245 = vld [vmem:[%s2 + $0x50] sm:$0xff]
  %v246 = vld [vmem:[%s2 + $0x58] sm:$0xff]
  %v247 = vld [vmem:[%s2 + $0x60] sm:$0xff]
  %v248 = vld [vmem:[%s2 + $0x68] sm:$0xff]
  %249 = vmatpush.msra.mxu0 %v38
  %250 = vmatpush.msra.mxu0 %v37
  %251 = vmatpush.msra.mxu0 %v36
  %252 = vmatpush.msra.mxu0 %v35
  %253 = vmatpush.msra.mxu0 %v34
  %254 = vmatpush.msra.mxu0 %v33
  %255 = vmatpush.msra.mxu0 %v32
  %256 = vmatpush.msra.mxu0 %v31
  %257 = vmatpush.msra.mxu0 %v30
  %258 = vmatpush.msra.mxu0 %v29
  %259 = vmatpush.msra.mxu0 %v28
  %260 = vmatpush.msra.mxu0 %v27
  %261 = vmatpush.msra.mxu0 %v26
  %262 = vmatpush.msra.mxu0 %v25
  %263 = vmatpush.msra.mxu0 %v24
  %264 = vmatpush.msra.mxu0 %v23
  %265 = vmatmul.f32.gmra.mxu0 %v235
  %v266 = vpop.f32.mrf.mxu0
  %v267 = vadd.f32 0.0, %v266
  %268 = vmatmul.f32.gmra.mxu0 %v237
  %v269 = vpop.f32.mrf.mxu0
  %v270 = vadd.f32 0.0, %v269
  %271 = vmatmul.f32.gmra.mxu0 %v239
  %v272 = vpop.f32.mrf.mxu0
  %v273 = vadd.f32 0.0, %v272
  %274 = vmatmul.f32.gmra.mxu0 %v241
  %v275 = vpop.f32.mrf.mxu0
  %v276 = vadd.f32 0.0, %v275
  %277 = vmatmul.f32.gmra.mxu0 %v243
  %v278 = vpop.f32.mrf.mxu0
  %v279 = vadd.f32 0.0, %v278
  %280 = vmatmul.f32.gmra.mxu0 %v245
  %v281 = vpop.f32.mrf.mxu0
  %v282 = vadd.f32 0.0, %v281
  %283 = vmatmul.f32.gmra.mxu0 %v247
  %v284 = vpop.f32.mrf.mxu0
  %v285 = vadd.f32 0.0, %v284
  %286 = vdwg.mxu0
  %287 = vmatpush.msra.mxu0 %v54
  %288 = vmatpush.msra.mxu0 %v53
  %289 = vmatpush.msra.mxu0 %v52
  %290 = vmatpush.msra.mxu0 %v51
  %291 = vmatpush.msra.mxu0 %v50
  %292 = vmatpush.msra.mxu0 %v49
  %293 = vmatpush.msra.mxu0 %v48
  %294 = vmatpush.msra.mxu0 %v47
  %295 = vmatpush.msra.mxu0 %v46
  %296 = vmatpush.msra.mxu0 %v45
  %297 = vmatpush.msra.mxu0 %v44
  %298 = vmatpush.msra.mxu0 %v43
  %299 = vmatpush.msra.mxu0 %v42
  %300 = vmatpush.msra.mxu0 %v41
  %301 = vmatpush.msra.mxu0 %v40
  %302 = vmatpush.msra.mxu0 %v39
  %303 = vmatmul.f32.gmra.mxu0 %v236
  %v304 = vpop.f32.mrf.mxu0
  %v305 = vadd.f32 %v267, %v304
  %306 = vmatmul.f32.gmra.mxu0 %v238
  %v307 = vpop.f32.mrf.mxu0
  %v308 = vadd.f32 %v270, %v307
  %309 = vmatmul.f32.gmra.mxu0 %v240
  %v310 = vpop.f32.mrf.mxu0
  %v311 = vadd.f32 %v273, %v310
  %312 = vmatmul.f32.gmra.mxu0 %v242
  %v313 = vpop.f32.mrf.mxu0
  %v314 = vadd.f32 %v276, %v313
  %315 = vmatmul.f32.gmra.mxu0 %v244
  %v316 = vpop.f32.mrf.mxu0
  %v317 = vadd.f32 %v279, %v316
  %318 = vmatmul.f32.gmra.mxu0 %v246
  %v319 = vpop.f32.mrf.mxu0
  %v320 = vadd.f32 %v282, %v319
  %321 = vmatmul.f32.gmra.mxu0 %v248
  %v322 = vpop.f32.mrf.mxu0
  %v323 = vadd.f32 %v285, %v322
  %324 = vdwg.mxu0
  %v325 = vld [vmem:[%s3] sm:$0xff]
  %v326 = vld [vmem:[%s3 + $0x8] sm:$0xff]
  %v327 = vld [vmem:[%s3 + $0x10] sm:$0xff]
  %v328 = vld [vmem:[%s3 + $0x18] sm:$0xff]
  %v329 = vld [vmem:[%s3 + $0x20] sm:$0xff]
  %v330 = vld [vmem:[%s3 + $0x28] sm:$0xff]
  %v331 = vld [vmem:[%s3 + $0x30] sm:$0xff]
  %v332 = vld [vmem:[%s3 + $0x38] sm:$0xff]
  %v333 = vld [vmem:[%s3 + $0x40] sm:$0xff]
  %v334 = vld [vmem:[%s3 + $0x48] sm:$0xff]
  %v335 = vld [vmem:[%s3 + $0x50] sm:$0xff]
  %v336 = vld [vmem:[%s3 + $0x58] sm:$0xff]
  %v337 = vld [vmem:[%s3 + $0x60] sm:$0xff]
  %v338 = vld [vmem:[%s3 + $0x68] sm:$0xff]
  %339 = vmatpush.msra.mxu0 %v38
  %340 = vmatpush.msra.mxu0 %v37
  %341 = vmatpush.msra.mxu0 %v36
  %342 = vmatpush.msra.mxu0 %v35
  %343 = vmatpush.msra.mxu0 %v34
  %344 = vmatpush.msra.mxu0 %v33
  %345 = vmatpush.msra.mxu0 %v32
  %346 = vmatpush.msra.mxu0 %v31
  %347 = vmatpush.msra.mxu0 %v30
  %348 = vmatpush.msra.mxu0 %v29
  %349 = vmatpush.msra.mxu0 %v28
  %350 = vmatpush.msra.mxu0 %v27
  %351 = vmatpush.msra.mxu0 %v26
  %352 = vmatpush.msra.mxu0 %v25
  %353 = vmatpush.msra.mxu0 %v24
  %354 = vmatpush.msra.mxu0 %v23
  %355 = vmatmul.f32.gmra.mxu0 %v325
  %v356 = vpop.f32.mrf.mxu0
  %v357 = vadd.f32 0.0, %v356
  %358 = vmatmul.f32.gmra.mxu0 %v327
  %v359 = vpop.f32.mrf.mxu0
  %v360 = vadd.f32 0.0, %v359
  %361 = vmatmul.f32.gmra.mxu0 %v329
  %v362 = vpop.f32.mrf.mxu0
  %v363 = vadd.f32 0.0, %v362
  %364 = vmatmul.f32.gmra.mxu0 %v331
  %v365 = vpop.f32.mrf.mxu0
  %v366 = vadd.f32 0.0, %v365
  %367 = vmatmul.f32.gmra.mxu0 %v333
  %v368 = vpop.f32.mrf.mxu0
  %v369 = vadd.f32 0.0, %v368
  %370 = vmatmul.f32.gmra.mxu0 %v335
  %v371 = vpop.f32.mrf.mxu0
  %v372 = vadd.f32 0.0, %v371
  %373 = vmatmul.f32.gmra.mxu0 %v337
  %v374 = vpop.f32.mrf.mxu0
  %v375 = vadd.f32 0.0, %v374
  %376 = vdwg.mxu0
  %377 = vmatpush.msra.mxu0 %v54
  %378 = vmatpush.msra.mxu0 %v53
  %379 = vmatpush.msra.mxu0 %v52
  %380 = vmatpush.msra.mxu0 %v51
  %381 = vmatpush.msra.mxu0 %v50
  %382 = vmatpush.msra.mxu0 %v49
  %383 = vmatpush.msra.mxu0 %v48
  %384 = vmatpush.msra.mxu0 %v47
  %385 = vmatpush.msra.mxu0 %v46
  %386 = vmatpush.msra.mxu0 %v45
  %387 = vmatpush.msra.mxu0 %v44
  %388 = vmatpush.msra.mxu0 %v43
  %389 = vmatpush.msra.mxu0 %v42
  %390 = vmatpush.msra.mxu0 %v41
  %391 = vmatpush.msra.mxu0 %v40
  %392 = vmatpush.msra.mxu0 %v39
  %393 = vmatmul.f32.gmra.mxu0 %v326
  %v394 = vpop.f32.mrf.mxu0
  %v395 = vadd.f32 %v357, %v394
  %396 = vmatmul.f32.gmra.mxu0 %v328
  %v397 = vpop.f32.mrf.mxu0
  %v398 = vadd.f32 %v360, %v397
  %399 = vmatmul.f32.gmra.mxu0 %v330
  %v400 = vpop.f32.mrf.mxu0
  %v401 = vadd.f32 %v363, %v400
  %402 = vmatmul.f32.gmra.mxu0 %v332
  %v403 = vpop.f32.mrf.mxu0
  %v404 = vadd.f32 %v366, %v403
  %405 = vmatmul.f32.gmra.mxu0 %v334
  %v406 = vpop.f32.mrf.mxu0
  %v407 = vadd.f32 %v369, %v406
  %408 = vmatmul.f32.gmra.mxu0 %v336
  %v409 = vpop.f32.mrf.mxu0
  %v410 = vadd.f32 %v372, %v409
  %411 = vmatmul.f32.gmra.mxu0 %v338
  %v412 = vpop.f32.mrf.mxu0
  %v413 = vadd.f32 %v375, %v412
  %414 = vdwg.mxu0
  %v415 = vmax.f32 %v125, %v215
  %v416 = vmax.f32 %v128, %v218
  %v417 = vmax.f32 %v131, %v221
  %v418 = vmax.f32 %v134, %v224
  %v419 = vmax.f32 %v137, %v227
  %v420 = vmax.f32 %v140, %v230
  %v421 = vmax.f32 %v143, %v233
  %v422 = vmax.f32 %v305, %v395
  %v423 = vmax.f32 %v308, %v398
  %v424 = vmax.f32 %v311, %v401
  %v425 = vmax.f32 %v314, %v404
  %v426 = vmax.f32 %v317, %v407
  %v427 = vmax.f32 %v320, %v410
  %v428 = vmax.f32 %v323, %v413
  %v429 = vmax.f32 %v415, %v422
  %v430 = vmax.f32 %v416, %v423
  %v431 = vmax.f32 %v417, %v424
  %v432 = vmax.f32 %v418, %v425
  %v433 = vmax.f32 %v419, %v426
  %v434 = vmax.f32 %v420, %v427
  %v435 = vmax.f32 %v421, %v428
  %v436 = vld [vmem:[%s5] sm:$0x1]
  %v438 = vperm.slane %v436, 0
  %v440 = vadd.f32 %v429, %v438
  %v441 = vadd.f32 %v430, %v438
  %v442 = vadd.f32 %v431, %v438
  %v443 = vadd.f32 %v432, %v438
  %v444 = vadd.f32 %v433, %v438
  %v445 = vadd.f32 %v434, %v438
  %v446 = vadd.f32 %v435, %v438
  %v447 = vmax.f32 %v440, 0.0
  %v448 = vmax.f32 %v441, 0.0
  %v449 = vmax.f32 %v442, 0.0
  %v450 = vmax.f32 %v443, 0.0
  %v451 = vmax.f32 %v444, 0.0
  %v452 = vmax.f32 %v445, 0.0
  %v453 = vmax.f32 %v446, 0.0
  %454 = vst [vmem:[%s6] sm:$0xff] %v447
  %455 = vst [vmem:[%s6 + $0x8] sm:$0xff] %v448
  %456 = vst [vmem:[%s6 + $0x10] sm:$0xff] %v449
  %457 = vst [vmem:[%s6 + $0x18] sm:$0xff] %v450
  %458 = vst [vmem:[%s6 + $0x20] sm:$0xff] %v451
  %459 = vst [vmem:[%s6 + $0x28] sm:$0xff] %v452
  %460 = vst [vmem:[%s6 + $0x30] sm:$0xff] %v453
  // Predicated region
  $region26: #{net_forward.4} parent=0 // pred_check
    _
  $region27: #{net_forward.4} parent=0 // pred_check_branch
    %462 = sbr.rel (0) target = $region29
  $region28: #{net_forward.4} parent=0 // pred_region
    _
  $region29: #{net_forward.4} parent=0 // pred_fallthru
    _
  // Predicated region
  $region30: #{net_forward.4} parent=0 // pred_check
    _
  $region31: #{net_forward.4} parent=0 // pred_check_branch
    %464 = sbr.rel (0) target = $region33
  $region32: #{net_forward.4} parent=0 // pred_region
    _
  $region33: #{net_forward.4} parent=0 // pred_fallthru
    _

// kernel: net_forward.5
$region0: #{net_forward.5}
  #allocation0 [shape = 'u32[]', space=smem, size = 0x4, offset = 0x4, fixed_abs, tag = 'smem constant byte address 0x4 - core index']
  #allocation1 [shape = 'u32[72,128]{1,0:T(1,128)}', space=vmem, size = 0x9000, scoped, tag = 'internal scratch']
  %s0 = inlined_call_operand.vmem [shape: f32[8,512], index: 0, kind: input, shape index: {}]
  %s1 = inlined_call_operand.vmem [shape: f32[512,128], index: 1, kind: input, shape index: {}]
  %s2 = inlined_call_operand.vmem [shape: f32[1,128], index: 2, kind: input, shape index: {}]
  %s3 = inlined_call_operand.vmem [shape: f32[128,128], index: 3, kind: input, shape index: {}]
  %s4 = inlined_call_operand.vmem [shape: f32[1,128], index: 4, kind: input, shape index: {}]
  %s5 = inlined_call_operand.vmem [shape: f32[128,128], index: 5, kind: input, shape index: {}]
  %s6 = inlined_call_operand.vmem [shape: f32[1,128], index: 6, kind: input, shape index: {}]
  %s7 = inlined_call_operand.vmem [shape: f32[8,128], index: 7, kind: output, shape index: {}]
  %s8 = sld [smem:[#allocation0]]
  $region38: #{net_forward.5} parent=0
    _
  %s10 = ssub.s32 1, %s8
  %s11 = scalar_select 0, %s10, %s8
  // Predicated region
  $region2: #{net_forward.5} parent=0 // pred_check
    _
  $region3: #{net_forward.5} parent=0 // pred_check_branch
    %13 = sbr.rel (0) target = $region5
  $region4: #{net_forward.5} parent=0 // pred_region
    _
  $region5: #{net_forward.5} parent=0 // pred_fallthru
    _
  // Predicated region
  $region6: #{net_forward.5} parent=0 // pred_check
    _
  $region7: #{net_forward.5} parent=0 // pred_check_branch
    %15 = sbr.rel (0) target = $region9
  $region8: #{net_forward.5} parent=0 // pred_region
    _
  $region9: #{net_forward.5} parent=0 // pred_fallthru
    _
  // Predicated region
  $region10: #{net_forward.5} parent=0 // pred_check
    _
  $region11: #{net_forward.5} parent=0 // pred_check_branch
    %17 = sbr.rel (0) target = $region13
  $region12: #{net_forward.5} parent=0 // pred_region
    _
  $region13: #{net_forward.5} parent=0 // pred_fallthru
    _
  // Predicated region
  $region14: #{net_forward.5} parent=0 // pred_check
    _
  $region15: #{net_forward.5} parent=0 // pred_check_branch
    %19 = sbr.rel (0) target = $region17
  $region16: #{net_forward.5} parent=0 // pred_region
    _
  $region17: #{net_forward.5} parent=0 // pred_fallthru
    _
  // Predicated region
  $region18: #{net_forward.5} parent=0 // pred_check
    _
  $region19: #{net_forward.5} parent=0 // pred_check_branch
    %21 = sbr.rel (0) target = $region21
  $region20: #{net_forward.5} parent=0 // pred_region
    _
  $region21: #{net_forward.5} parent=0 // pred_fallthru
    _
  // Predicated region
  $region22: #{net_forward.5} parent=0 // pred_check
    _
  $region23: #{net_forward.5} parent=0 // pred_check_branch
    %23 = sbr.rel (0) target = $region25
  $region24: #{net_forward.5} parent=0 // pred_region
    _
  $region25: #{net_forward.5} parent=0 // pred_fallthru
    _
  // Predicated region
  $region26: #{net_forward.5} parent=0 // pred_check
    _
  $region27: #{net_forward.5} parent=0 // pred_check_branch
    %25 = sbr.rel (0) target = $region29
  $region28: #{net_forward.5} parent=0 // pred_region
    _
  $region29: #{net_forward.5} parent=0 // pred_fallthru
    _
  %v26 = vld [vmem:[%s0] sm:$0xff]
  %v27 = vld [vmem:[%s0 + $0x8] sm:$0xff]
  %v28 = vld [vmem:[%s0 + $0x10] sm:$0xff]
  %v29 = vld [vmem:[%s0 + $0x18] sm:$0xff]
  %v30 = vld [vmem:[%s1] sm:$0xff]
  %v31 = vld [vmem:[%s1 + $0x8] sm:$0xff]
  %v32 = vld [vmem:[%s1 + $0x10] sm:$0xff]
  %v33 = vld [vmem:[%s1 + $0x18] sm:$0xff]
  %v34 = vld [vmem:[%s1 + $0x20] sm:$0xff]
  %v35 = vld [vmem:[%s1 + $0x28] sm:$0xff]
  %v36 = vld [vmem:[%s1 + $0x30] sm:$0xff]
  %v37 = vld [vmem:[%s1 + $0x38] sm:$0xff]
  %v38 = vld [vmem:[%s1 + $0x40] sm:$0xff]
  %v39 = vld [vmem:[%s1 + $0x48] sm:$0xff]
  %v40 = vld [vmem:[%s1 + $0x50] sm:$0xff]
  %v41 = vld [vmem:[%s1 + $0x58] sm:$0xff]
  %v42 = vld [vmem:[%s1 + $0x60] sm:$0xff]
  %v43 = vld [vmem:[%s1 + $0x68] sm:$0xff]
  %v44 = vld [vmem:[%s1 + $0x70] sm:$0xff]
  %v45 = vld [vmem:[%s1 + $0x78] sm:$0xff]
  %v46 = vld [vmem:[%s1 + $0x80] sm:$0xff]
  %v47 = vld [vmem:[%s1 + $0x88] sm:$0xff]
  %v48 = vld [vmem:[%s1 + $0x90] sm:$0xff]
  %v49 = vld [vmem:[%s1 + $0x98] sm:$0xff]
  %v50 = vld [vmem:[%s1 + $0xa0] sm:$0xff]
  %v51 = vld [vmem:[%s1 + $0xa8] sm:$0xff]
  %v52 = vld [vmem:[%s1 + $0xb0] sm:$0xff]
  %v53 = vld [vmem:[%s1 + $0xb8] sm:$0xff]
  %v54 = vld [vmem:[%s1 + $0xc0] sm:$0xff]
  %v55 = vld [vmem:[%s1 + $0xc8] sm:$0xff]
  %v56 = vld [vmem:[%s1 + $0xd0] sm:$0xff]
  %v57 = vld [vmem:[%s1 + $0xd8] sm:$0xff]
  %v58 = vld [vmem:[%s1 + $0xe0] sm:$0xff]
  %v59 = vld [vmem:[%s1 + $0xe8] sm:$0xff]
  %v60 = vld [vmem:[%s1 + $0xf0] sm:$0xff]
  %v61 = vld [vmem:[%s1 + $0xf8] sm:$0xff]
  %v62 = vld [vmem:[%s1 + $0x100] sm:$0xff]
  %v63 = vld [vmem:[%s1 + $0x108] sm:$0xff]
  %v64 = vld [vmem:[%s1 + $0x110] sm:$0xff]
  %v65 = vld [vmem:[%s1 + $0x118] sm:$0xff]
  %v66 = vld [vmem:[%s1 + $0x120] sm:$0xff]
  %v67 = vld [vmem:[%s1 + $0x128] sm:$0xff]
  %v68 = vld [vmem:[%s1 + $0x130] sm:$0xff]
  %v69 = vld [vmem:[%s1 + $0x138] sm:$0xff]
  %v70 = vld [vmem:[%s1 + $0x140] sm:$0xff]
  %v71 = vld [vmem:[%s1 + $0x148] sm:$0xff]
  %v72 = vld [vmem:[%s1 + $0x150] sm:$0xff]
  %v73 = vld [vmem:[%s1 + $0x158] sm:$0xff]
  %v74 = vld [vmem:[%s1 + $0x160] sm:$0xff]
  %v75 = vld [vmem:[%s1 + $0x168] sm:$0xff]
  %v76 = vld [vmem:[%s1 + $0x170] sm:$0xff]
  %v77 = vld [vmem:[%s1 + $0x178] sm:$0xff]
  %v78 = vld [vmem:[%s1 + $0x180] sm:$0xff]
  %v79 = vld [vmem:[%s1 + $0x188] sm:$0xff]
  %v80 = vld [vmem:[%s1 + $0x190] sm:$0xff]
  %v81 = vld [vmem:[%s1 + $0x198] sm:$0xff]
  %v82 = vld [vmem:[%s1 + $0x1a0] sm:$0xff]
  %v83 = vld [vmem:[%s1 + $0x1a8] sm:$0xff]
  %v84 = vld [vmem:[%s1 + $0x1b0] sm:$0xff]
  %v85 = vld [vmem:[%s1 + $0x1b8] sm:$0xff]
  %v86 = vld [vmem:[%s1 + $0x1c0] sm:$0xff]
  %v87 = vld [vmem:[%s1 + $0x1c8] sm:$0xff]
  %v88 = vld [vmem:[%s1 + $0x1d0] sm:$0xff]
  %v89 = vld [vmem:[%s1 + $0x1d8] sm:$0xff]
  %v90 = vld [vmem:[%s1 + $0x1e0] sm:$0xff]
  %v91 = vld [vmem:[%s1 + $0x1e8] sm:$0xff]
  %v92 = vld [vmem:[%s1 + $0x1f0] sm:$0xff]
  %v93 = vld [vmem:[%s1 + $0x1f8] sm:$0xff]
  %v94 = vld [vmem:[%s2] sm:$0x1]
  %v96 = vperm.slane %v94, 0
  %98 = vmatpush.msra.mxu0 %v45
  %99 = vmatpush.msra.mxu0 %v44
  %100 = vmatpush.msra.mxu0 %v43
  %101 = vmatpush.msra.mxu0 %v42
  %102 = vmatpush.msra.mxu0 %v41
  %103 = vmatpush.msra.mxu0 %v40
  %104 = vmatpush.msra.mxu0 %v39
  %105 = vmatpush.msra.mxu0 %v38
  %106 = vmatpush.msra.mxu0 %v37
  %107 = vmatpush.msra.mxu0 %v36
  %108 = vmatpush.msra.mxu0 %v35
  %109 = vmatpush.msra.mxu0 %v34
  %110 = vmatpush.msra.mxu0 %v33
  %111 = vmatpush.msra.mxu0 %v32
  %112 = vmatpush.msra.mxu0 %v31
  %113 = vmatpush.msra.mxu0 %v30
  %114 = vmatmul.f32.gmra.mxu0 %v26
  %v115 = vpop.f32.mrf.mxu0
  %v116 = vadd.f32 %v96, %v115
  %117 = vdwg.mxu0
  %118 = vmatpush.msra.mxu0 %v61
  %119 = vmatpush.msra.mxu0 %v60
  %120 = vmatpush.msra.mxu0 %v59
  %121 = vmatpush.msra.mxu0 %v58
  %122 = vmatpush.msra.mxu0 %v57
  %123 = vmatpush.msra.mxu0 %v56
  %124 = vmatpush.msra.mxu0 %v55
  %125 = vmatpush.msra.mxu0 %v54
  %126 = vmatpush.msra.mxu0 %v53
  %127 = vmatpush.msra.mxu0 %v52
  %128 = vmatpush.msra.mxu0 %v51
  %129 = vmatpush.msra.mxu0 %v50
  %130 = vmatpush.msra.mxu0 %v49
  %131 = vmatpush.msra.mxu0 %v48
  %132 = vmatpush.msra.mxu0 %v47
  %133 = vmatpush.msra.mxu0 %v46
  %134 = vmatmul.f32.gmra.mxu0 %v27
  %v135 = vpop.f32.mrf.mxu0
  %v136 = vadd.f32 %v116, %v135
  %137 = vdwg.mxu0
  %138 = vmatpush.msra.mxu0 %v77
  %139 = vmatpush.msra.mxu0 %v76
  %140 = vmatpush.msra.mxu0 %v75
  %141 = vmatpush.msra.mxu0 %v74
  %142 = vmatpush.msra.mxu0 %v73
  %143 = vmatpush.msra.mxu0 %v72
  %144 = vmatpush.msra.mxu0 %v71
  %145 = vmatpush.msra.mxu0 %v70
  %146 = vmatpush.msra.mxu0 %v69
  %147 = vmatpush.msra.mxu0 %v68
  %148 = vmatpush.msra.mxu0 %v67
  %149 = vmatpush.msra.mxu0 %v66
  %150 = vmatpush.msra.mxu0 %v65
  %151 = vmatpush.msra.mxu0 %v64
  %152 = vmatpush.msra.mxu0 %v63
  %153 = vmatpush.msra.mxu0 %v62
  %154 = vmatmul.f32.gmra.mxu0 %v28
  %v155 = vpop.f32.mrf.mxu0
  %v156 = vadd.f32 %v136, %v155
  %157 = vdwg.mxu0
  %158 = vmatpush.msra.mxu0 %v93
  %159 = vmatpush.msra.mxu0 %v92
  %160 = vmatpush.msra.mxu0 %v91
  %161 = vmatpush.msra.mxu0 %v90
  %162 = vmatpush.msra.mxu0 %v89
  %163 = vmatpush.msra.mxu0 %v88
  %164 = vmatpush.msra.mxu0 %v87
  %165 = vmatpush.msra.mxu0 %v86
  %166 = vmatpush.msra.mxu0 %v85
  %167 = vmatpush.msra.mxu0 %v84
  %168 = vmatpush.msra.mxu0 %v83
  %169 = vmatpush.msra.mxu0 %v82
  %170 = vmatpush.msra.mxu0 %v81
  %171 = vmatpush.msra.mxu0 %v80
  %172 = vmatpush.msra.mxu0 %v79
  %173 = vmatpush.msra.mxu0 %v78
  %174 = vmatmul.f32.gmra.mxu0 %v29
  %v175 = vpop.f32.mrf.mxu0
  %v176 = vadd.f32 %v156, %v175
  %177 = vdwg.mxu0
  %v178 = vmax.f32 %v176, 0.0
  %v179 = vld [vmem:[%s3] sm:$0xff]
  %v180 = vld [vmem:[%s3 + $0x8] sm:$0xff]
  %v181 = vld [vmem:[%s3 + $0x10] sm:$0xff]
  %v182 = vld [vmem:[%s3 + $0x18] sm:$0xff]
  %v183 = vld [vmem:[%s3 + $0x20] sm:$0xff]
  %v184 = vld [vmem:[%s3 + $0x28] sm:$0xff]
  %v185 = vld [vmem:[%s3 + $0x30] sm:$0xff]
  %v186 = vld [vmem:[%s3 + $0x38] sm:$0xff]
  %v187 = vld [vmem:[%s3 + $0x40] sm:$0xff]
  %v188 = vld [vmem:[%s3 + $0x48] sm:$0xff]
  %v189 = vld [vmem:[%s3 + $0x50] sm:$0xff]
  %v190 = vld [vmem:[%s3 + $0x58] sm:$0xff]
  %v191 = vld [vmem:[%s3 + $0x60] sm:$0xff]
  %v192 = vld [vmem:[%s3 + $0x68] sm:$0xff]
  %v193 = vld [vmem:[%s3 + $0x70] sm:$0xff]
  %v194 = vld [vmem:[%s3 + $0x78] sm:$0xff]
  %v195 = vld [vmem:[%s4] sm:$0x1]
  %v197 = vperm.slane %v195, 0
  %199 = vmatpush.msra.mxu0 %v194
  %200 = vmatpush.msra.mxu0 %v193
  %201 = vmatpush.msra.mxu0 %v192
  %202 = vmatpush.msra.mxu0 %v191
  %203 = vmatpush.msra.mxu0 %v190
  %204 = vmatpush.msra.mxu0 %v189
  %205 = vmatpush.msra.mxu0 %v188
  %206 = vmatpush.msra.mxu0 %v187
  %207 = vmatpush.msra.mxu0 %v186
  %208 = vmatpush.msra.mxu0 %v185
  %209 = vmatpush.msra.mxu0 %v184
  %210 = vmatpush.msra.mxu0 %v183
  %211 = vmatpush.msra.mxu0 %v182
  %212 = vmatpush.msra.mxu0 %v181
  %213 = vmatpush.msra.mxu0 %v180
  %214 = vmatpush.msra.mxu0 %v179
  %215 = vmatmul.f32.gmra.mxu0 %v178
  %v216 = vpop.f32.mrf.mxu0
  %v217 = vadd.f32 %v197, %v216
  %218 = vdwg.mxu0
  %v219 = vmax.f32 %v217, 0.0
  %v220 = vld [vmem:[%s5] sm:$0xff]
  %v221 = vld [vmem:[%s5 + $0x8] sm:$0xff]
  %v222 = vld [vmem:[%s5 + $0x10] sm:$0xff]
  %v223 = vld [vmem:[%s5 + $0x18] sm:$0xff]
  %v224 = vld [vmem:[%s5 + $0x20] sm:$0xff]
  %v225 = vld [vmem:[%s5 + $0x28] sm:$0xff]
  %v226 = vld [vmem:[%s5 + $0x30] sm:$0xff]
  %v227 = vld [vmem:[%s5 + $0x38] sm:$0xff]
  %v228 = vld [vmem:[%s5 + $0x40] sm:$0xff]
  %v229 = vld [vmem:[%s5 + $0x48] sm:$0xff]
  %v230 = vld [vmem:[%s5 + $0x50] sm:$0xff]
  %v231 = vld [vmem:[%s5 + $0x58] sm:$0xff]
  %v232 = vld [vmem:[%s5 + $0x60] sm:$0xff]
  %v233 = vld [vmem:[%s5 + $0x68] sm:$0xff]
  %v234 = vld [vmem:[%s5 + $0x70] sm:$0xff]
  %v235 = vld [vmem:[%s5 + $0x78] sm:$0xff]
  %v236 = vld [vmem:[%s6] sm:$0x1]
  %v238 = vperm.slane %v236, 0
  %240 = vmatpush.msra.mxu0 %v235
  %241 = vmatpush.msra.mxu0 %v234
  %242 = vmatpush.msra.mxu0 %v233
  %243 = vmatpush.msra.mxu0 %v232
  %244 = vmatpush.msra.mxu0 %v231
  %245 = vmatpush.msra.mxu0 %v230
  %246 = vmatpush.msra.mxu0 %v229
  %247 = vmatpush.msra.mxu0 %v228
  %248 = vmatpush.msra.mxu0 %v227
  %249 = vmatpush.msra.mxu0 %v226
  %250 = vmatpush.msra.mxu0 %v225
  %251 = vmatpush.msra.mxu0 %v224
  %252 = vmatpush.msra.mxu0 %v223
  %253 = vmatpush.msra.mxu0 %v222
  %254 = vmatpush.msra.mxu0 %v221
  %255 = vmatpush.msra.mxu0 %v220
  %256 = vmatmul.f32.gmra.mxu0 %v219
  %v257 = vpop.f32.mrf.mxu0
  %v258 = vadd.f32 %v238, %v257
  %259 = vdwg.mxu0
  %260 = vst [vmem:[%s7] sm:$0xff] %v258
  // Predicated region
  $region30: #{net_forward.5} parent=0 // pred_check
    _
  $region31: #{net_forward.5} parent=0 // pred_check_branch
    %262 = sbr.rel (0) target = $region33
  $region32: #{net_forward.5} parent=0 // pred_region
    _
  $region33: #{net_forward.5} parent=0 // pred_fallthru
    _
  // Predicated region
  $region34: #{net_forward.5} parent=0 // pred_check
    _
  $region35: #{net_forward.5} parent=0 // pred_check_branch
    %264 = sbr.rel (0) target = $region37
  $region36: #{net_forward.5} parent=0 // pred_region
    _
  $region37: #{net_forward.5} parent=0 // pred_fallthru
    _

</llo_original>
